<compile_context>
chip_gen: v5e
topology: v5e:2x2
jax: 0.10.0
libtpu: 0.0.40
codegen_flags: <defaults>
</compile_context>

<pallas_src>
import jax
import jax.numpy as jnp
import numpy as np
from jax.experimental import pallas as pl
from jax.experimental.pallas import tpu as pltpu

IN_FEATURES = 32 * 32      # 1024
H1 = 512
H2 = 256
OUT_FEATURES = 14
OUT_PAD = 128              # lane-dense padded width of the final layer


def _round_up(x, m):
    return ((x + m - 1) // m) * m


def _num_tensorcores():
    """Best-effort TensorCores-per-chip (2 on v7x, 1 on v5e/v6e). Falls back to 1."""
    try:
        info = pltpu.get_tpu_info()
    except Exception:
        return 1
    for attr in ("num_cores", "core_count", "num_tensorcores",
                 "tensorcores_per_chip", "cores_per_chip"):
        n = getattr(info, attr, None)
        if isinstance(n, int) and n > 0:
            return int(n)
    return 1


def _mlp_kernel(x_ref, w1_ref, b1_ref, w2_ref, b2_ref, w3_ref, b3_ref, o_ref):
    tb = x_ref.shape[0]
    # Statically-unrolled 128-row sub-blocks: MXU work of sub-block j+1 overlaps
    # the VPU (bias+ReLU+cast) epilogue of sub-block j.
    sub = 128 if (tb > 128 and tb % 128 == 0) else tb
    for r0 in range(0, tb, sub):
        rows = pl.ds(r0, sub)                        # static, aligned offsets
        # Fused flatten + bf16 cast (input tile arrives as f32).
        xb = x_ref[rows, :].astype(jnp.bfloat16)

        # Layer 1: (sub,1024)bf16 @ (1024,512)bf16 -> f32 acc, + bias, ReLU (f32 epilogue)
        h1 = jnp.dot(xb, w1_ref[...], preferred_element_type=jnp.float32)
        h1 = jnp.maximum(h1 + b1_ref[...], 0.0)
        # Dropout (p=0.5) -> identity in eval mode.

        # Layer 2: (sub,512)bf16 @ (512,256)bf16 -> f32 acc, + bias, ReLU
        h2 = jnp.dot(h1.astype(jnp.bfloat16), w2_ref[...],
                     preferred_element_type=jnp.float32)
        h2 = jnp.maximum(h2 + b2_ref[...], 0.0)
        # Dropout (p=0.5) -> identity in eval mode.

        # Layer 3 (lane-padded to 128): (sub,256)bf16 @ (256,128)bf16 -> f32
        logits = jnp.dot(h2.astype(jnp.bfloat16), w3_ref[...],
                         preferred_element_type=jnp.float32)
        o_ref[rows, :] = (logits + b3_ref[...]).astype(o_ref.dtype)


def prepare_params(params):
    """One-time prep: bf16 weights, f32 biases, last layer zero-padded to 128 wide."""
    w1, b1, w2, b2, w3, b3 = params
    w3p = jnp.zeros((H2, OUT_PAD), jnp.float32).at[:, :OUT_FEATURES].set(w3)
    b3p = jnp.zeros((1, OUT_PAD), jnp.float32).at[:, :OUT_FEATURES].set(b3)
    return (w1.astype(jnp.bfloat16), b1.astype(jnp.float32),
            w2.astype(jnp.bfloat16), b2.astype(jnp.float32),
            w3p.astype(jnp.bfloat16), b3p.astype(jnp.float32))


def model_linear_forward(image, prepared_params, *, tb_max=512):
    """image: (B, C, H, W) with C*H*W == 1024. Returns logits (B, 14) in f32."""
    w1, b1, w2, b2, w3p, b3p = prepared_params
    B = image.shape[0]
    # Flatten is a metadata-only reshape for contiguous NCHW input; the bf16
    # cast is done inside the kernel (fused), so x stays f32 here.
    x = image.reshape(B, -1).astype(jnp.float32)
    assert x.shape[1] == IN_FEATURES

    # Batch-tile selection: biggest tile up to tb_max (multiple of 8 sublanes).
    # Only force >=2 grid steps when the chip has >=2 TensorCores (v7x megacore);
    # on single-TC v5e/v6e the grid is a serial loop and splitting just adds
    # per-step overhead.
    b_al = _round_up(B, 8)
    tb = min(tb_max, b_al)
    if _num_tensorcores() >= 2 and (b_al // tb) < 2 and b_al >= 16:
        tb = _round_up(pl.cdiv(b_al, 2), 8)
    B_pad = _round_up(B, tb)
    if B_pad != B:
        x = jnp.pad(x, ((0, B_pad - B), (0, 0)))

    grid = (B_pad // tb,)
    full = lambda i: (0, 0)  # weights/biases: same resident block every grid step

    weight_bytes = 2 * (IN_FEATURES * H1 + H1 * H2 + H2 * OUT_PAD)      # bf16
    bias_bytes = 4 * (H1 + H2 + OUT_PAD)                                 # f32
    cost = pl.CostEstimate(
        flops=2 * B_pad * (IN_FEATURES * H1 + H1 * H2 + H2 * OUT_PAD),
        transcendentals=0,
        bytes_accessed=(B_pad * IN_FEATURES * 4        # x (f32, cast in-kernel)
                        + weight_bytes + bias_bytes
                        + B_pad * OUT_PAD * 4),        # padded f32 output
    )

    out = pl.pallas_call(
        _mlp_kernel,
        out_shape=jax.ShapeDtypeStruct((B_pad, OUT_PAD), jnp.float32),
        grid_spec=pltpu.PrefetchScalarGridSpec(
            num_scalar_prefetch=0,
            grid=grid,
            in_specs=[
                pl.BlockSpec((tb, IN_FEATURES), lambda i: (i, 0)),   # x tile (f32)
                pl.BlockSpec((IN_FEATURES, H1), full),               # W1 (bf16)
                pl.BlockSpec((1, H1), full),                         # b1 (f32)
                pl.BlockSpec((H1, H2), full),                        # W2 (bf16)
                pl.BlockSpec((1, H2), full),                         # b2 (f32)
                pl.BlockSpec((H2, OUT_PAD), full),                   # W3 padded (bf16)
                pl.BlockSpec((1, OUT_PAD), full),                    # b3 padded (f32)
            ],
            out_specs=pl.BlockSpec((tb, OUT_PAD), lambda i: (i, 0)),  # lane-dense store
        ),
        compiler_params=pltpu.CompilerParams(
            # TODO(synk): if xprof shows the v7x grid not sharding across both
            # TensorCores, switch this axis to pltpu.CORE_PARALLEL.
            dimension_semantics=("parallel",),
        ),
        cost_estimate=cost,
    )(x, w1, b1, w2, b2, w3p, b3p)

    return out[:B, :OUT_FEATURES]


def init_params(key):
    """Deterministic init mimicking torch.nn.Linear defaults (uniform +-1/sqrt(fan_in))."""
    ks = jax.random.split(key, 6)

    def linear(kw, kb, fan_in, fan_out):
        bound = 1.0 / np.sqrt(fan_in)
        w = jax.random.uniform(kw, (fan_in, fan_out), jnp.float32, -bound, bound)
        b = jax.random.uniform(kb, (1, fan_out), jnp.float32, -bound, bound)
        return w, b

    w1, b1 = linear(ks[0], ks[1], IN_FEATURES, H1)
    w2, b2 = linear(ks[2], ks[3], H1, H2)
    w3, b3 = linear(ks[4], ks[5], H2, OUT_FEATURES)
    return (w1, b1, w2, b2, w3, b3)


def _reference(image, params):
    """Reference with the same bf16-input / f32-accumulate math as the kernel."""
    w1, b1, w2, b2, w3, b3 = params
    bf = lambda a: a.astype(jnp.bfloat16).astype(jnp.float32)
    x = bf(image.reshape(image.shape[0], -1))
    h1 = jnp.maximum(x @ bf(w1) + b1, 0.0)
    h2 = jnp.maximum(bf(h1) @ bf(w2) + b2, 0.0)
    return bf(h2) @ bf(w3) + b3


if __name__ == "__main__":
    key = jax.random.PRNGKey(0)
    k_img, k_par = jax.random.split(key)

    params = init_params(k_par)
    prepared = prepare_params(params)

    # Small batch of single-channel 32x32 "images" (NCHW), as the 32*32 Linear implies.
    image = jax.random.normal(k_img, (2, 1, 32, 32), dtype=jnp.float32)
    logits = jax.block_until_ready(model_linear_forward(image, prepared))
    ref = _reference(image, params)
    np.testing.assert_allclose(np.asarray(logits), np.asarray(ref), rtol=1e-2, atol=1e-2)
    assert logits.shape == (2, OUT_FEATURES)

    # Uneven batch exercises the padding / slicing path.
    image2 = jax.random.normal(jax.random.PRNGKey(1), (6, 1, 32, 32), dtype=jnp.float32)
    logits2 = jax.block_until_ready(model_linear_forward(image2, prepared))
    ref2 = _reference(image2, params)
    np.testing.assert_allclose(np.asarray(logits2), np.asarray(ref2), rtol=1e-2, atol=1e-2)
    assert logits2.shape == (6, OUT_FEATURES)

    print("KERNEL_OK")
</pallas_src>

<mosaic_0001>
module attributes {stable_mosaic.version = 11 : i64} {
  func.func @_mlp_kernel(%arg0: i32, %arg1: memref<8x1024xf32, #tpu.memory_space<vmem>>, %arg2: memref<1024x512xbf16, #tpu.memory_space<vmem>>, %arg3: memref<1x512xf32, #tpu.memory_space<vmem>>, %arg4: memref<512x256xbf16, #tpu.memory_space<vmem>>, %arg5: memref<1x256xf32, #tpu.memory_space<vmem>>, %arg6: memref<256x128xbf16, #tpu.memory_space<vmem>>, %arg7: memref<1x128xf32, #tpu.memory_space<vmem>>, %arg8: memref<8x128xf32, #tpu.memory_space<vmem>>) attributes {dimension_semantics = [#tpu.dimension_semantics<parallel>], iteration_bounds = array<i64: 1>, scalar_prefetch = 0 : i64, scratch_operands = 0 : i64, tpu.core_type = #tpu.core_type<tc>, window_params = [{transform_indices = @transform_0, window_bounds = array<i64: 8, 1024>}, {pipeline_mode = #tpu.pipeline_mode<synchronous>, transform_indices = @transform_1, window_bounds = array<i64: 1024, 512>}, {pipeline_mode = #tpu.pipeline_mode<synchronous>, transform_indices = @transform_2, window_bounds = array<i64: 1, 512>}, {pipeline_mode = #tpu.pipeline_mode<synchronous>, transform_indices = @transform_3, window_bounds = array<i64: 512, 256>}, {pipeline_mode = #tpu.pipeline_mode<synchronous>, transform_indices = @transform_4, window_bounds = array<i64: 1, 256>}, {pipeline_mode = #tpu.pipeline_mode<synchronous>, transform_indices = @transform_5, window_bounds = array<i64: 256, 128>}, {pipeline_mode = #tpu.pipeline_mode<synchronous>, transform_indices = @transform_6, window_bounds = array<i64: 1, 128>}, {transform_indices = @transform_7, window_bounds = array<i64: 8, 128>}]} {
    %c0 = arith.constant 0 : index
    %c0_0 = arith.constant 0 : index
    %0 = vector.load %arg1[%c0, %c0_0] : memref<8x1024xf32, #tpu.memory_space<vmem>>, vector<8x1024xf32>
    %1 = arith.truncf %0 : vector<8x1024xf32> to vector<8x1024xbf16>
    %c0_1 = arith.constant 0 : index
    %c0_2 = arith.constant 0 : index
    %2 = vector.load %arg2[%c0_1, %c0_2] : memref<1024x512xbf16, #tpu.memory_space<vmem>>, vector<1024x512xbf16>
    %cst = arith.constant dense<0.000000e+00> : vector<8x512xf32>
    %3 = tpu.matmul %1, %2, %cst {dimension_numbers = #tpu.dot_dimension_numbers<[1], [0], [0], [1], [0, 0, 1, 1], [], []>} : vector<8x1024xbf16>, vector<1024x512xbf16>, vector<8x512xf32> -> vector<8x512xf32>
    %c0_3 = arith.constant 0 : index
    %c0_4 = arith.constant 0 : index
    %4 = vector.load %arg3[%c0_3, %c0_4] : memref<1x512xf32, #tpu.memory_space<vmem>>, vector<1x512xf32>
    %5 = vector.broadcast %4 : vector<1x512xf32> to vector<8x512xf32>
    %6 = arith.addf %3, %5 : vector<8x512xf32>
    %cst_5 = arith.constant 0.000000e+00 : f32
    %7 = vector.broadcast %cst_5 : f32 to vector<8x512xf32>
    %8 = arith.maximumf %6, %7 : vector<8x512xf32>
    %9 = arith.truncf %8 : vector<8x512xf32> to vector<8x512xbf16>
    %c0_6 = arith.constant 0 : index
    %c0_7 = arith.constant 0 : index
    %10 = vector.load %arg4[%c0_6, %c0_7] : memref<512x256xbf16, #tpu.memory_space<vmem>>, vector<512x256xbf16>
    %cst_8 = arith.constant dense<0.000000e+00> : vector<8x256xf32>
    %11 = tpu.matmul %9, %10, %cst_8 {dimension_numbers = #tpu.dot_dimension_numbers<[1], [0], [0], [1], [0, 0, 1, 1], [], []>} : vector<8x512xbf16>, vector<512x256xbf16>, vector<8x256xf32> -> vector<8x256xf32>
    %c0_9 = arith.constant 0 : index
    %c0_10 = arith.constant 0 : index
    %12 = vector.load %arg5[%c0_9, %c0_10] : memref<1x256xf32, #tpu.memory_space<vmem>>, vector<1x256xf32>
    %13 = vector.broadcast %12 : vector<1x256xf32> to vector<8x256xf32>
    %14 = arith.addf %11, %13 : vector<8x256xf32>
    %cst_11 = arith.constant 0.000000e+00 : f32
    %15 = vector.broadcast %cst_11 : f32 to vector<8x256xf32>
    %16 = arith.maximumf %14, %15 : vector<8x256xf32>
    %17 = arith.truncf %16 : vector<8x256xf32> to vector<8x256xbf16>
    %c0_12 = arith.constant 0 : index
    %c0_13 = arith.constant 0 : index
    %18 = vector.load %arg6[%c0_12, %c0_13] : memref<256x128xbf16, #tpu.memory_space<vmem>>, vector<256x128xbf16>
    %cst_14 = arith.constant dense<0.000000e+00> : vector<8x128xf32>
    %19 = tpu.matmul %17, %18, %cst_14 {dimension_numbers = #tpu.dot_dimension_numbers<[1], [0], [0], [1], [0, 0, 1, 1], [], []>} : vector<8x256xbf16>, vector<256x128xbf16>, vector<8x128xf32> -> vector<8x128xf32>
    %c0_15 = arith.constant 0 : index
    %c0_16 = arith.constant 0 : index
    %20 = vector.load %arg7[%c0_15, %c0_16] : memref<1x128xf32, #tpu.memory_space<vmem>>, vector<1x128xf32>
    %21 = vector.broadcast %20 : vector<1x128xf32> to vector<8x128xf32>
    %22 = arith.addf %19, %21 : vector<8x128xf32>
    %c0_17 = arith.constant 0 : index
    %c0_18 = arith.constant 0 : index
    %23 = vector.load %arg8[%c0_17, %c0_18] : memref<8x128xf32, #tpu.memory_space<vmem>>, vector<8x128xf32>
    tpu.vector_store %arg8[%c0_17, %c0_18], %22 {strides = array<i32>} : memref<8x128xf32, #tpu.memory_space<vmem>>, vector<8x128xf32>,
    return
  }
  func.func @transform_0(%arg0: i32) -> (i32, i32) {
    %c0_i32 = arith.constant 0 : i32
    %c0_i32_0 = arith.constant 0 : i32
    return %arg0, %c0_i32 : i32, i32
  }
  func.func @transform_1(%arg0: i32) -> (i32, i32) {
    %c0_i32 = arith.constant 0 : i32
    %c0_i32_0 = arith.constant 0 : i32
    %c0_i32_1 = arith.constant 0 : i32
    return %c0_i32, %c0_i32_0 : i32, i32
  }
  func.func @transform_2(%arg0: i32) -> (i32, i32) {
    %c0_i32 = arith.constant 0 : i32
    %c0_i32_0 = arith.constant 0 : i32
    %c0_i32_1 = arith.constant 0 : i32
    return %c0_i32, %c0_i32_0 : i32, i32
  }
  func.func @transform_3(%arg0: i32) -> (i32, i32) {
    %c0_i32 = arith.constant 0 : i32
    %c0_i32_0 = arith.constant 0 : i32
    %c0_i32_1 = arith.constant 0 : i32
    return %c0_i32, %c0_i32_0 : i32, i32
  }
  func.func @transform_4(%arg0: i32) -> (i32, i32) {
    %c0_i32 = arith.constant 0 : i32
    %c0_i32_0 = arith.constant 0 : i32
    %c0_i32_1 = arith.constant 0 : i32
    return %c0_i32, %c0_i32_0 : i32, i32
  }
  func.func @transform_5(%arg0: i32) -> (i32, i32) {
    %c0_i32 = arith.constant 0 : i32
    %c0_i32_0 = arith.constant 0 : i32
    %c0_i32_1 = arith.constant 0 : i32
    return %c0_i32, %c0_i32_0 : i32, i32
  }
  func.func @transform_6(%arg0: i32) -> (i32, i32) {
    %c0_i32 = arith.constant 0 : i32
    %c0_i32_0 = arith.constant 0 : i32
    %c0_i32_1 = arith.constant 0 : i32
    return %c0_i32, %c0_i32_0 : i32, i32
  }
  func.func @transform_7(%arg0: i32) -> (i32, i32) {
    %c0_i32 = arith.constant 0 : i32
    %c0_i32_0 = arith.constant 0 : i32
    return %arg0, %c0_i32 : i32, i32
  }
}

</mosaic_0001>

<llo_original>
// kernel: tpu_custom_call.1
$region0: #{tpu_custom_call.1}
  #allocation0 [shape = 'u32[]', space=smem, size = 0x4, offset = 0x4, fixed_abs, tag = 'smem constant byte address 0x4 - core index']
  #allocation1 [shape = 'u32[72,128]{1,0:T(1,128)}', space=vmem, size = 0x9000, scoped, tag = 'internal scratch']
  %s0 = inlined_call_operand.hbm [shape: f32[8,1024], index: 0, kind: input, shape index: {}]
  %s1 = inlined_call_operand.hbm [shape: bf16[1024,512], index: 1, kind: input, shape index: {}]
  %s2 = inlined_call_operand.hbm [shape: f32[1,512], index: 2, kind: input, shape index: {}]
  %s3 = inlined_call_operand.hbm [shape: bf16[512,256], index: 3, kind: input, shape index: {}]
  %s4 = inlined_call_operand.vmem [shape: f32[1,256], index: 4, kind: input, shape index: {}]
  %s5 = inlined_call_operand.hbm [shape: bf16[256,128], index: 5, kind: input, shape index: {}]
  %s6 = inlined_call_operand.vmem [shape: f32[1,128], index: 6, kind: input, shape index: {}]
  %s7 = inlined_call_operand.hbm [shape: f32[8,128], index: 7, kind: output, shape index: {}]
  %s8 = sld [smem:[#allocation0]]
  $region58: #{tpu_custom_call.1} parent=0
    _
  %s10 = ssub.s32 1, %s8
  %s11 = scalar_select 0, %s10, %s8
  $region1: #{tpu_custom_call.1} parent=0
    #allocation2 [shape = 'u8[32768]{0}', space=vmem, size = 0x8000, scoped, tag = 'input window, operand 0, single buffered']
    #allocation3 [shape = 's32[1]{0}', space=sflag, size = 0x4, scoped, tag = 'scoped memory for tpu_custom_call.1']
    #allocation4 [shape = 's32[1]{0}', space=sflag, size = 0x4, scoped, tag = 'scoped memory for tpu_custom_call.1']
    #allocation5 [shape = 'u8[1048576]{0}', space=vmem, size = 0x100000, scoped, tag = 'input window, operand 1, single buffered']
    #allocation6 [shape = 's32[1]{0}', space=sflag, size = 0x4, scoped, tag = 'scoped memory for tpu_custom_call.1']
    #allocation7 [shape = 'u8[2048]{0}', space=vmem, size = 0x800, scoped, tag = 'input window, operand 2, single buffered']
    #allocation8 [shape = 'u8[262144]{0}', space=vmem, size = 0x40000, scoped, tag = 'input window, operand 3, single buffered']
    #allocation9 [shape = 's32[1]{0}', space=sflag, size = 0x4, scoped, tag = 'scoped memory for tpu_custom_call.1']
    #allocation10 [shape = 'u8[65536]{0}', space=vmem, size = 0x10000, scoped, tag = 'input window, operand 5, single buffered']
    #allocation11 [shape = 'u8[4096]{0}', space=vmem, size = 0x1000, scoped, tag = 'output window, operand 0, single buffered']
    %12 = vsyncpa [#allocation3], 0
    %13 = vsyncpa [#allocation6], 0
    %14 = vsyncpa [#allocation9], 0
    %15 = vsyncpa [#allocation4], 0
    // Predicated region
    $region2: #{tpu_custom_call.1} parent=1 // pred_check
      _
    $region3: #{tpu_custom_call.1} parent=1 // pred_check_branch
      %17 = sbr.rel (0) target = $region5
    $region4: #{tpu_custom_call.1} parent=1 // pred_region
      %19 = vsyncadd [#allocation3], 0
      %s21 = sshll.u32 %s0, 4
      %s22 = int_to_ptr.hbm [resolvable:$true] %s21
      %s23 = sshll.u32 [#allocation2], 4
      %s24 = int_to_ptr.vmem [resolvable:$true] %s23
      %26 = dma.hbm_to_vmem [thread:$0]  %s22, 1024, %s24, [#allocation3]
    $region5: #{tpu_custom_call.1} parent=1 // pred_fallthru
      _
    // Predicated region
    $region6: #{tpu_custom_call.1} parent=1 // pred_check
      _
    $region7: #{tpu_custom_call.1} parent=1 // pred_check_branch
      %28 = sbr.rel (0) target = $region9
    $region8: #{tpu_custom_call.1} parent=1 // pred_region
      %30 = vsyncadd [#allocation6], 0
      %s31 = sshll.u32 %s1, 4
      %s32 = int_to_ptr.hbm [resolvable:$true] %s31
      %s33 = sshll.u32 [#allocation5], 4
      %s34 = int_to_ptr.vmem [resolvable:$true] %s33
      %39 = dma.hbm_to_vmem [thread:$0]  %s32, 32768, %s34, [#allocation6], 256, 256, 16
    $region9: #{tpu_custom_call.1} parent=1 // pred_fallthru
      _
    // Predicated region
    $region10: #{tpu_custom_call.1} parent=1 // pred_check
      _
    $region11: #{tpu_custom_call.1} parent=1 // pred_check_branch
      %41 = sbr.rel (0) target = $region13
    $region12: #{tpu_custom_call.1} parent=1 // pred_region
      %43 = vsyncadd [#allocation6], 0
      %s45 = sshll.u32 %s2, 4
      %s46 = int_to_ptr.hbm [resolvable:$true] %s45
      %s47 = sshll.u32 [#allocation7], 4
      %s48 = int_to_ptr.vmem [resolvable:$true] %s47
      %50 = dma.hbm_to_vmem [thread:$0]  %s46, 64, %s48, [#allocation6]
    $region13: #{tpu_custom_call.1} parent=1 // pred_fallthru
      _
    // Predicated region
    $region14: #{tpu_custom_call.1} parent=1 // pred_check
      _
    $region15: #{tpu_custom_call.1} parent=1 // pred_check_branch
      %52 = sbr.rel (0) target = $region17
    $region16: #{tpu_custom_call.1} parent=1 // pred_region
      %54 = vsyncadd [#allocation9], 0
      %s55 = sshll.u32 %s3, 4
      %s56 = int_to_ptr.hbm [resolvable:$true] %s55
      %s57 = sshll.u32 [#allocation8], 4
      %s58 = int_to_ptr.vmem [resolvable:$true] %s57
      %63 = dma.hbm_to_vmem [thread:$0]  %s56, 8192, %s58, [#allocation9], 128, 128, 8
    $region17: #{tpu_custom_call.1} parent=1 // pred_fallthru
      _
    // Predicated region
    $region18: #{tpu_custom_call.1} parent=1 // pred_check
      _
    $region19: #{tpu_custom_call.1} parent=1 // pred_check_branch
      %65 = sbr.rel (0) target = $region21
    $region20: #{tpu_custom_call.1} parent=1 // pred_region
      _
    $region21: #{tpu_custom_call.1} parent=1 // pred_fallthru
      _
    // Predicated region
    $region22: #{tpu_custom_call.1} parent=1 // pred_check
      _
    $region23: #{tpu_custom_call.1} parent=1 // pred_check_branch
      %67 = sbr.rel (0) target = $region25
    $region24: #{tpu_custom_call.1} parent=1 // pred_region
      %69 = vsyncadd [#allocation9], 0
      %s70 = sshll.u32 %s5, 4
      %s71 = int_to_ptr.hbm [resolvable:$true] %s70
      %s72 = sshll.u32 [#allocation10], 4
      %s73 = int_to_ptr.vmem [resolvable:$true] %s72
      %78 = dma.hbm_to_vmem [thread:$0]  %s71, 2048, %s73, [#allocation9], 64, 64, 4
    $region25: #{tpu_custom_call.1} parent=1 // pred_fallthru
      _
    // Predicated region
    $region26: #{tpu_custom_call.1} parent=1 // pred_check
      _
    $region27: #{tpu_custom_call.1} parent=1 // pred_check_branch
      %80 = sbr.rel (0) target = $region29
    $region28: #{tpu_custom_call.1} parent=1 // pred_region
      _
    $region29: #{tpu_custom_call.1} parent=1 // pred_fallthru
      _
    // Predicated region
    $region30: #{tpu_custom_call.1} parent=1 // pred_check
      _
    $region31: #{tpu_custom_call.1} parent=1 // pred_check_branch
      %82 = sbr.rel (0) target = $region33
    $region32: #{tpu_custom_call.1} parent=1 // pred_region
      %84 = dma.done [#allocation3], 1024
    $region33: #{tpu_custom_call.1} parent=1 // pred_fallthru
      _
    // Predicated region
    $region34: #{tpu_custom_call.1} parent=1 // pred_check
      _
    $region35: #{tpu_custom_call.1} parent=1 // pred_check_branch
      %86 = sbr.rel (0) target = $region37
    $region36: #{tpu_custom_call.1} parent=1 // pred_region
      %88 = dma.done [#allocation6], 32768
    $region37: #{tpu_custom_call.1} parent=1 // pred_fallthru
      _
    // Predicated region
    $region38: #{tpu_custom_call.1} parent=1 // pred_check
      _
    $region39: #{tpu_custom_call.1} parent=1 // pred_check_branch
      %90 = sbr.rel (0) target = $region41
    $region40: #{tpu_custom_call.1} parent=1 // pred_region
      %92 = dma.done [#allocation6], 64
    $region41: #{tpu_custom_call.1} parent=1 // pred_fallthru
      _
    // Predicated region
    $region42: #{tpu_custom_call.1} parent=1 // pred_check
      _
    $region43: #{tpu_custom_call.1} parent=1 // pred_check_branch
      %94 = sbr.rel (0) target = $region45
    $region44: #{tpu_custom_call.1} parent=1 // pred_region
      %96 = dma.done [#allocation9], 8192
    $region45: #{tpu_custom_call.1} parent=1 // pred_fallthru
      _
    // Predicated region
    $region46: #{tpu_custom_call.1} parent=1 // pred_check
      _
    $region47: #{tpu_custom_call.1} parent=1 // pred_check_branch
      %98 = sbr.rel (0) target = $region49
    $region48: #{tpu_custom_call.1} parent=1 // pred_region
      %100 = dma.done [#allocation9], 2048
    $region49: #{tpu_custom_call.1} parent=1 // pred_fallthru
      _
    %v101 = vld [vmem:[#allocation2] sm:$0xff]
    %v102 = vld [vmem:[#allocation2 + $0x8] sm:$0xff]
    %v103 = vld [vmem:[#allocation2 + $0x10] sm:$0xff]
    %v104 = vld [vmem:[#allocation2 + $0x18] sm:$0xff]
    %v105 = vld [vmem:[#allocation2 + $0x20] sm:$0xff]
    %v106 = vld [vmem:[#allocation2 + $0x28] sm:$0xff]
    %v107 = vld [vmem:[#allocation2 + $0x30] sm:$0xff]
    %v108 = vld [vmem:[#allocation2 + $0x38] sm:$0xff]
    %v109 = vpack.c.bf16 %v101, %v101
    %v110 = vpack.c.bf16 %v102, %v102
    %v111 = vpack.c.bf16 %v103, %v103
    %v112 = vpack.c.bf16 %v104, %v104
    %v113 = vpack.c.bf16 %v105, %v105
    %v114 = vpack.c.bf16 %v106, %v106
    %v115 = vpack.c.bf16 %v107, %v107
    %v116 = vpack.c.bf16 %v108, %v108
    %v117 = vld [vmem:[#allocation5] sm:$0xff]
    %v118 = vld [vmem:[#allocation5 + $0x8] sm:$0xff]
    %v119 = vld [vmem:[#allocation5 + $0x10] sm:$0xff]
    %v120 = vld [vmem:[#allocation5 + $0x18] sm:$0xff]
    %v121 = vld [vmem:[#allocation5 + $0x20] sm:$0xff]
    %v122 = vld [vmem:[#allocation5 + $0x28] sm:$0xff]
    %v123 = vld [vmem:[#allocation5 + $0x30] sm:$0xff]
    %v124 = vld [vmem:[#allocation5 + $0x38] sm:$0xff]
    %v125 = vld [vmem:[#allocation5 + $0x40] sm:$0xff]
    %v126 = vld [vmem:[#allocation5 + $0x48] sm:$0xff]
    %v127 = vld [vmem:[#allocation5 + $0x50] sm:$0xff]
    %v128 = vld [vmem:[#allocation5 + $0x58] sm:$0xff]
    %v129 = vld [vmem:[#allocation5 + $0x60] sm:$0xff]
    %v130 = vld [vmem:[#allocation5 + $0x68] sm:$0xff]
    %v131 = vld [vmem:[#allocation5 + $0x70] sm:$0xff]
    %v132 = vld [vmem:[#allocation5 + $0x78] sm:$0xff]
    %v133 = vld [vmem:[#allocation5 + $0x80] sm:$0xff]
    %v134 = vld [vmem:[#allocation5 + $0x88] sm:$0xff]
    %v135 = vld [vmem:[#allocation5 + $0x90] sm:$0xff]
    %v136 = vld [vmem:[#allocation5 + $0x98] sm:$0xff]
    %v137 = vld [vmem:[#allocation5 + $0xa0] sm:$0xff]
    %v138 = vld [vmem:[#allocation5 + $0xa8] sm:$0xff]
    %v139 = vld [vmem:[#allocation5 + $0xb0] sm:$0xff]
    %v140 = vld [vmem:[#allocation5 + $0xb8] sm:$0xff]
    %v141 = vld [vmem:[#allocation5 + $0xc0] sm:$0xff]
    %v142 = vld [vmem:[#allocation5 + $0xc8] sm:$0xff]
    %v143 = vld [vmem:[#allocation5 + $0xd0] sm:$0xff]
    %v144 = vld [vmem:[#allocation5 + $0xd8] sm:$0xff]
    %v145 = vld [vmem:[#allocation5 + $0xe0] sm:$0xff]
    %v146 = vld [vmem:[#allocation5 + $0xe8] sm:$0xff]
    %v147 = vld [vmem:[#allocation5 + $0xf0] sm:$0xff]
    %v148 = vld [vmem:[#allocation5 + $0xf8] sm:$0xff]
    %v149 = vld [vmem:[#allocation5 + $0x100] sm:$0xff]
    %v150 = vld [vmem:[#allocation5 + $0x108] sm:$0xff]
    %v151 = vld [vmem:[#allocation5 + $0x110] sm:$0xff]
    %v152 = vld [vmem:[#allocation5 + $0x118] sm:$0xff]
    %v153 = vld [vmem:[#allocation5 + $0x120] sm:$0xff]
    %v154 = vld [vmem:[#allocation5 + $0x128] sm:$0xff]
    %v155 = vld [vmem:[#allocation5 + $0x130] sm:$0xff]
    %v156 = vld [vmem:[#allocation5 + $0x138] sm:$0xff]
    %v157 = vld [vmem:[#allocation5 + $0x140] sm:$0xff]
    %v158 = vld [vmem:[#allocation5 + $0x148] sm:$0xff]
    %v159 = vld [vmem:[#allocation5 + $0x150] sm:$0xff]
    %v160 = vld [vmem:[#allocation5 + $0x158] sm:$0xff]
    %v161 = vld [vmem:[#allocation5 + $0x160] sm:$0xff]
    %v162 = vld [vmem:[#allocation5 + $0x168] sm:$0xff]
    %v163 = vld [vmem:[#allocation5 + $0x170] sm:$0xff]
    %v164 = vld [vmem:[#allocation5 + $0x178] sm:$0xff]
    %v165 = vld [vmem:[#allocation5 + $0x180] sm:$0xff]
    %v166 = vld [vmem:[#allocation5 + $0x188] sm:$0xff]
    %v167 = vld [vmem:[#allocation5 + $0x190] sm:$0xff]
    %v168 = vld [vmem:[#allocation5 + $0x198] sm:$0xff]
    %v169 = vld [vmem:[#allocation5 + $0x1a0] sm:$0xff]
    %v170 = vld [vmem:[#allocation5 + $0x1a8] sm:$0xff]
    %v171 = vld [vmem:[#allocation5 + $0x1b0] sm:$0xff]
    %v172 = vld [vmem:[#allocation5 + $0x1b8] sm:$0xff]
    %v173 = vld [vmem:[#allocation5 + $0x1c0] sm:$0xff]
    %v174 = vld [vmem:[#allocation5 + $0x1c8] sm:$0xff]
    %v175 = vld [vmem:[#allocation5 + $0x1d0] sm:$0xff]
    %v176 = vld [vmem:[#allocation5 + $0x1d8] sm:$0xff]
    %v177 = vld [vmem:[#allocation5 + $0x1e0] sm:$0xff]
    %v178 = vld [vmem:[#allocation5 + $0x1e8] sm:$0xff]
    %v179 = vld [vmem:[#allocation5 + $0x1f0] sm:$0xff]
    %v180 = vld [vmem:[#allocation5 + $0x1f8] sm:$0xff]
    %v181 = vld [vmem:[#allocation5 + $0x200] sm:$0xff]
    %v182 = vld [vmem:[#allocation5 + $0x208] sm:$0xff]
    %v183 = vld [vmem:[#allocation5 + $0x210] sm:$0xff]
    %v184 = vld [vmem:[#allocation5 + $0x218] sm:$0xff]
    %v185 = vld [vmem:[#allocation5 + $0x220] sm:$0xff]
    %v186 = vld [vmem:[#allocation5 + $0x228] sm:$0xff]
    %v187 = vld [vmem:[#allocation5 + $0x230] sm:$0xff]
    %v188 = vld [vmem:[#allocation5 + $0x238] sm:$0xff]
    %v189 = vld [vmem:[#allocation5 + $0x240] sm:$0xff]
    %v190 = vld [vmem:[#allocation5 + $0x248] sm:$0xff]
    %v191 = vld [vmem:[#allocation5 + $0x250] sm:$0xff]
    %v192 = vld [vmem:[#allocation5 + $0x258] sm:$0xff]
    %v193 = vld [vmem:[#allocation5 + $0x260] sm:$0xff]
    %v194 = vld [vmem:[#allocation5 + $0x268] sm:$0xff]
    %v195 = vld [vmem:[#allocation5 + $0x270] sm:$0xff]
    %v196 = vld [vmem:[#allocation5 + $0x278] sm:$0xff]
    %v197 = vld [vmem:[#allocation5 + $0x280] sm:$0xff]
    %v198 = vld [vmem:[#allocation5 + $0x288] sm:$0xff]
    %v199 = vld [vmem:[#allocation5 + $0x290] sm:$0xff]
    %v200 = vld [vmem:[#allocation5 + $0x298] sm:$0xff]
    %v201 = vld [vmem:[#allocation5 + $0x2a0] sm:$0xff]
    %v202 = vld [vmem:[#allocation5 + $0x2a8] sm:$0xff]
    %v203 = vld [vmem:[#allocation5 + $0x2b0] sm:$0xff]
    %v204 = vld [vmem:[#allocation5 + $0x2b8] sm:$0xff]
    %v205 = vld [vmem:[#allocation5 + $0x2c0] sm:$0xff]
    %v206 = vld [vmem:[#allocation5 + $0x2c8] sm:$0xff]
    %v207 = vld [vmem:[#allocation5 + $0x2d0] sm:$0xff]
    %v208 = vld [vmem:[#allocation5 + $0x2d8] sm:$0xff]
    %v209 = vld [vmem:[#allocation5 + $0x2e0] sm:$0xff]
    %v210 = vld [vmem:[#allocation5 + $0x2e8] sm:$0xff]
    %v211 = vld [vmem:[#allocation5 + $0x2f0] sm:$0xff]
    %v212 = vld [vmem:[#allocation5 + $0x2f8] sm:$0xff]
    %v213 = vld [vmem:[#allocation5 + $0x300] sm:$0xff]
    %v214 = vld [vmem:[#allocation5 + $0x308] sm:$0xff]
    %v215 = vld [vmem:[#allocation5 + $0x310] sm:$0xff]
    %v216 = vld [vmem:[#allocation5 + $0x318] sm:$0xff]
    %v217 = vld [vmem:[#allocation5 + $0x320] sm:$0xff]
    %v218 = vld [vmem:[#allocation5 + $0x328] sm:$0xff]
    %v219 = vld [vmem:[#allocation5 + $0x330] sm:$0xff]
    %v220 = vld [vmem:[#allocation5 + $0x338] sm:$0xff]
    %v221 = vld [vmem:[#allocation5 + $0x340] sm:$0xff]
    %v222 = vld [vmem:[#allocation5 + $0x348] sm:$0xff]
    %v223 = vld [vmem:[#allocation5 + $0x350] sm:$0xff]
    %v224 = vld [vmem:[#allocation5 + $0x358] sm:$0xff]
    %v225 = vld [vmem:[#allocation5 + $0x360] sm:$0xff]
    %v226 = vld [vmem:[#allocation5 + $0x368] sm:$0xff]
    %v227 = vld [vmem:[#allocation5 + $0x370] sm:$0xff]
    %v228 = vld [vmem:[#allocation5 + $0x378] sm:$0xff]
    %v229 = vld [vmem:[#allocation5 + $0x380] sm:$0xff]
    %v230 = vld [vmem:[#allocation5 + $0x388] sm:$0xff]
    %v231 = vld [vmem:[#allocation5 + $0x390] sm:$0xff]
    %v232 = vld [vmem:[#allocation5 + $0x398] sm:$0xff]
    %v233 = vld [vmem:[#allocation5 + $0x3a0] sm:$0xff]
    %v234 = vld [vmem:[#allocation5 + $0x3a8] sm:$0xff]
    %v235 = vld [vmem:[#allocation5 + $0x3b0] sm:$0xff]
    %v236 = vld [vmem:[#allocation5 + $0x3b8] sm:$0xff]
    %v237 = vld [vmem:[#allocation5 + $0x3c0] sm:$0xff]
    %v238 = vld [vmem:[#allocation5 + $0x3c8] sm:$0xff]
    %v239 = vld [vmem:[#allocation5 + $0x3d0] sm:$0xff]
    %v240 = vld [vmem:[#allocation5 + $0x3d8] sm:$0xff]
    %v241 = vld [vmem:[#allocation5 + $0x3e0] sm:$0xff]
    %v242 = vld [vmem:[#allocation5 + $0x3e8] sm:$0xff]
    %v243 = vld [vmem:[#allocation5 + $0x3f0] sm:$0xff]
    %v244 = vld [vmem:[#allocation5 + $0x3f8] sm:$0xff]
    %v245 = vld [vmem:[#allocation5 + $0x400] sm:$0xff]
    %v246 = vld [vmem:[#allocation5 + $0x408] sm:$0xff]
    %v247 = vld [vmem:[#allocation5 + $0x410] sm:$0xff]
    %v248 = vld [vmem:[#allocation5 + $0x418] sm:$0xff]
    %v249 = vld [vmem:[#allocation5 + $0x420] sm:$0xff]
    %v250 = vld [vmem:[#allocation5 + $0x428] sm:$0xff]
    %v251 = vld [vmem:[#allocation5 + $0x430] sm:$0xff]
    %v252 = vld [vmem:[#allocation5 + $0x438] sm:$0xff]
    %v253 = vld [vmem:[#allocation5 + $0x440] sm:$0xff]
    %v254 = vld [vmem:[#allocation5 + $0x448] sm:$0xff]
    %v255 = vld [vmem:[#allocation5 + $0x450] sm:$0xff]
    %v256 = vld [vmem:[#allocation5 + $0x458] sm:$0xff]
    %v257 = vld [vmem:[#allocation5 + $0x460] sm:$0xff]
    %v258 = vld [vmem:[#allocation5 + $0x468] sm:$0xff]
    %v259 = vld [vmem:[#allocation5 + $0x470] sm:$0xff]
    %v260 = vld [vmem:[#allocation5 + $0x478] sm:$0xff]
    %v261 = vld [vmem:[#allocation5 + $0x480] sm:$0xff]
    %v262 = vld [vmem:[#allocation5 + $0x488] sm:$0xff]
    %v263 = vld [vmem:[#allocation5 + $0x490] sm:$0xff]
    %v264 = vld [vmem:[#allocation5 + $0x498] sm:$0xff]
    %v265 = vld [vmem:[#allocation5 + $0x4a0] sm:$0xff]
    %v266 = vld [vmem:[#allocation5 + $0x4a8] sm:$0xff]
    %v267 = vld [vmem:[#allocation5 + $0x4b0] sm:$0xff]
    %v268 = vld [vmem:[#allocation5 + $0x4b8] sm:$0xff]
    %v269 = vld [vmem:[#allocation5 + $0x4c0] sm:$0xff]
    %v270 = vld [vmem:[#allocation5 + $0x4c8] sm:$0xff]
    %v271 = vld [vmem:[#allocation5 + $0x4d0] sm:$0xff]
    %v272 = vld [vmem:[#allocation5 + $0x4d8] sm:$0xff]
    %v273 = vld [vmem:[#allocation5 + $0x4e0] sm:$0xff]
    %v274 = vld [vmem:[#allocation5 + $0x4e8] sm:$0xff]
    %v275 = vld [vmem:[#allocation5 + $0x4f0] sm:$0xff]
    %v276 = vld [vmem:[#allocation5 + $0x4f8] sm:$0xff]
    %v277 = vld [vmem:[#allocation5 + $0x500] sm:$0xff]
    %v278 = vld [vmem:[#allocation5 + $0x508] sm:$0xff]
    %v279 = vld [vmem:[#allocation5 + $0x510] sm:$0xff]
    %v280 = vld [vmem:[#allocation5 + $0x518] sm:$0xff]
    %v281 = vld [vmem:[#allocation5 + $0x520] sm:$0xff]
    %v282 = vld [vmem:[#allocation5 + $0x528] sm:$0xff]
    %v283 = vld [vmem:[#allocation5 + $0x530] sm:$0xff]
    %v284 = vld [vmem:[#allocation5 + $0x538] sm:$0xff]
    %v285 = vld [vmem:[#allocation5 + $0x540] sm:$0xff]
    %v286 = vld [vmem:[#allocation5 + $0x548] sm:$0xff]
    %v287 = vld [vmem:[#allocation5 + $0x550] sm:$0xff]
    %v288 = vld [vmem:[#allocation5 + $0x558] sm:$0xff]
    %v289 = vld [vmem:[#allocation5 + $0x560] sm:$0xff]
    %v290 = vld [vmem:[#allocation5 + $0x568] sm:$0xff]
    %v291 = vld [vmem:[#allocation5 + $0x570] sm:$0xff]
    %v292 = vld [vmem:[#allocation5 + $0x578] sm:$0xff]
    %v293 = vld [vmem:[#allocation5 + $0x580] sm:$0xff]
    %v294 = vld [vmem:[#allocation5 + $0x588] sm:$0xff]
    %v295 = vld [vmem:[#allocation5 + $0x590] sm:$0xff]
    %v296 = vld [vmem:[#allocation5 + $0x598] sm:$0xff]
    %v297 = vld [vmem:[#allocation5 + $0x5a0] sm:$0xff]
    %v298 = vld [vmem:[#allocation5 + $0x5a8] sm:$0xff]
    %v299 = vld [vmem:[#allocation5 + $0x5b0] sm:$0xff]
    %v300 = vld [vmem:[#allocation5 + $0x5b8] sm:$0xff]
    %v301 = vld [vmem:[#allocation5 + $0x5c0] sm:$0xff]
    %v302 = vld [vmem:[#allocation5 + $0x5c8] sm:$0xff]
    %v303 = vld [vmem:[#allocation5 + $0x5d0] sm:$0xff]
    %v304 = vld [vmem:[#allocation5 + $0x5d8] sm:$0xff]
    %v305 = vld [vmem:[#allocation5 + $0x5e0] sm:$0xff]
    %v306 = vld [vmem:[#allocation5 + $0x5e8] sm:$0xff]
    %v307 = vld [vmem:[#allocation5 + $0x5f0] sm:$0xff]
    %v308 = vld [vmem:[#allocation5 + $0x5f8] sm:$0xff]
    %v309 = vld [vmem:[#allocation5 + $0x600] sm:$0xff]
    %v310 = vld [vmem:[#allocation5 + $0x608] sm:$0xff]
    %v311 = vld [vmem:[#allocation5 + $0x610] sm:$0xff]
    %v312 = vld [vmem:[#allocation5 + $0x618] sm:$0xff]
    %v313 = vld [vmem:[#allocation5 + $0x620] sm:$0xff]
    %v314 = vld [vmem:[#allocation5 + $0x628] sm:$0xff]
    %v315 = vld [vmem:[#allocation5 + $0x630] sm:$0xff]
    %v316 = vld [vmem:[#allocation5 + $0x638] sm:$0xff]
    %v317 = vld [vmem:[#allocation5 + $0x640] sm:$0xff]
    %v318 = vld [vmem:[#allocation5 + $0x648] sm:$0xff]
    %v319 = vld [vmem:[#allocation5 + $0x650] sm:$0xff]
    %v320 = vld [vmem:[#allocation5 + $0x658] sm:$0xff]
    %v321 = vld [vmem:[#allocation5 + $0x660] sm:$0xff]
    %v322 = vld [vmem:[#allocation5 + $0x668] sm:$0xff]
    %v323 = vld [vmem:[#allocation5 + $0x670] sm:$0xff]
    %v324 = vld [vmem:[#allocation5 + $0x678] sm:$0xff]
    %v325 = vld [vmem:[#allocation5 + $0x680] sm:$0xff]
    %v326 = vld [vmem:[#allocation5 + $0x688] sm:$0xff]
    %v327 = vld [vmem:[#allocation5 + $0x690] sm:$0xff]
    %v328 = vld [vmem:[#allocation5 + $0x698] sm:$0xff]
    %v329 = vld [vmem:[#allocation5 + $0x6a0] sm:$0xff]
    %v330 = vld [vmem:[#allocation5 + $0x6a8] sm:$0xff]
    %v331 = vld [vmem:[#allocation5 + $0x6b0] sm:$0xff]
    %v332 = vld [vmem:[#allocation5 + $0x6b8] sm:$0xff]
    %v333 = vld [vmem:[#allocation5 + $0x6c0] sm:$0xff]
    %v334 = vld [vmem:[#allocation5 + $0x6c8] sm:$0xff]
    %v335 = vld [vmem:[#allocation5 + $0x6d0] sm:$0xff]
    %v336 = vld [vmem:[#allocation5 + $0x6d8] sm:$0xff]
    %v337 = vld [vmem:[#allocation5 + $0x6e0] sm:$0xff]
    %v338 = vld [vmem:[#allocation5 + $0x6e8] sm:$0xff]
    %v339 = vld [vmem:[#allocation5 + $0x6f0] sm:$0xff]
    %v340 = vld [vmem:[#allocation5 + $0x6f8] sm:$0xff]
    %v341 = vld [vmem:[#allocation5 + $0x700] sm:$0xff]
    %v342 = vld [vmem:[#allocation5 + $0x708] sm:$0xff]
    %v343 = vld [vmem:[#allocation5 + $0x710] sm:$0xff]
    %v344 = vld [vmem:[#allocation5 + $0x718] sm:$0xff]
    %v345 = vld [vmem:[#allocation5 + $0x720] sm:$0xff]
    %v346 = vld [vmem:[#allocation5 + $0x728] sm:$0xff]
    %v347 = vld [vmem:[#allocation5 + $0x730] sm:$0xff]
    %v348 = vld [vmem:[#allocation5 + $0x738] sm:$0xff]
    %v349 = vld [vmem:[#allocation5 + $0x740] sm:$0xff]
    %v350 = vld [vmem:[#allocation5 + $0x748] sm:$0xff]
    %v351 = vld [vmem:[#allocation5 + $0x750] sm:$0xff]
    %v352 = vld [vmem:[#allocation5 + $0x758] sm:$0xff]
    %v353 = vld [vmem:[#allocation5 + $0x760] sm:$0xff]
    %v354 = vld [vmem:[#allocation5 + $0x768] sm:$0xff]
    %v355 = vld [vmem:[#allocation5 + $0x770] sm:$0xff]
    %v356 = vld [vmem:[#allocation5 + $0x778] sm:$0xff]
    %v357 = vld [vmem:[#allocation5 + $0x780] sm:$0xff]
    %v358 = vld [vmem:[#allocation5 + $0x788] sm:$0xff]
    %v359 = vld [vmem:[#allocation5 + $0x790] sm:$0xff]
    %v360 = vld [vmem:[#allocation5 + $0x798] sm:$0xff]
    %v361 = vld [vmem:[#allocation5 + $0x7a0] sm:$0xff]
    %v362 = vld [vmem:[#allocation5 + $0x7a8] sm:$0xff]
    %v363 = vld [vmem:[#allocation5 + $0x7b0] sm:$0xff]
    %v364 = vld [vmem:[#allocation5 + $0x7b8] sm:$0xff]
    %v365 = vld [vmem:[#allocation5 + $0x7c0] sm:$0xff]
    %v366 = vld [vmem:[#allocation5 + $0x7c8] sm:$0xff]
    %v367 = vld [vmem:[#allocation5 + $0x7d0] sm:$0xff]
    %v368 = vld [vmem:[#allocation5 + $0x7d8] sm:$0xff]
    %v369 = vld [vmem:[#allocation5 + $0x7e0] sm:$0xff]
    %v370 = vld [vmem:[#allocation5 + $0x7e8] sm:$0xff]
    %v371 = vld [vmem:[#allocation5 + $0x7f0] sm:$0xff]
    %v372 = vld [vmem:[#allocation5 + $0x7f8] sm:$0xff]
    %v373 = vld [vmem:[#allocation7] sm:$0xf]
    %v375 = vperm.slane %v373, 0
    %v376 = vperm.slane %v373, 1
    %v377 = vperm.slane %v373, 2
    %v378 = vperm.slane %v373, 3
    %v639 = vunpack.c.l.b16 %v117
    %v640 = vunpack.c.h.b16 %v117
    %v641 = vunpack.c.l.b16 %v118
    %v642 = vunpack.c.h.b16 %v118
    %v643 = vunpack.c.l.b16 %v119
    %v644 = vunpack.c.h.b16 %v119
    %v645 = vunpack.c.l.b16 %v120
    %v646 = vunpack.c.h.b16 %v120
    %v647 = vunpack.c.l.b16 %v121
    %v648 = vunpack.c.h.b16 %v121
    %v649 = vunpack.c.l.b16 %v122
    %v650 = vunpack.c.h.b16 %v122
    %v651 = vunpack.c.l.b16 %v123
    %v652 = vunpack.c.h.b16 %v123
    %v653 = vunpack.c.l.b16 %v124
    %v654 = vunpack.c.h.b16 %v124
    %v655 = vunpack.c.l.b16 %v125
    %v656 = vunpack.c.h.b16 %v125
    %v657 = vunpack.c.l.b16 %v126
    %v658 = vunpack.c.h.b16 %v126
    %v659 = vunpack.c.l.b16 %v127
    %v660 = vunpack.c.h.b16 %v127
    %v661 = vunpack.c.l.b16 %v128
    %v662 = vunpack.c.h.b16 %v128
    %v663 = vunpack.c.l.b16 %v129
    %v664 = vunpack.c.h.b16 %v129
    %v665 = vunpack.c.l.b16 %v130
    %v666 = vunpack.c.h.b16 %v130
    %v667 = vunpack.c.l.b16 %v131
    %v668 = vunpack.c.h.b16 %v131
    %v669 = vunpack.c.l.b16 %v132
    %v670 = vunpack.c.h.b16 %v132
    %v671 = vunpack.c.l.b16 %v133
    %v672 = vunpack.c.h.b16 %v133
    %v673 = vunpack.c.l.b16 %v134
    %v674 = vunpack.c.h.b16 %v134
    %v675 = vunpack.c.l.b16 %v135
    %v676 = vunpack.c.h.b16 %v135
    %v677 = vunpack.c.l.b16 %v136
    %v678 = vunpack.c.h.b16 %v136
    %v679 = vunpack.c.l.b16 %v137
    %v680 = vunpack.c.h.b16 %v137
    %v681 = vunpack.c.l.b16 %v138
    %v682 = vunpack.c.h.b16 %v138
    %v683 = vunpack.c.l.b16 %v139
    %v684 = vunpack.c.h.b16 %v139
    %v685 = vunpack.c.l.b16 %v140
    %v686 = vunpack.c.h.b16 %v140
    %v687 = vunpack.c.l.b16 %v141
    %v688 = vunpack.c.h.b16 %v141
    %v689 = vunpack.c.l.b16 %v142
    %v690 = vunpack.c.h.b16 %v142
    %v691 = vunpack.c.l.b16 %v143
    %v692 = vunpack.c.h.b16 %v143
    %v693 = vunpack.c.l.b16 %v144
    %v694 = vunpack.c.h.b16 %v144
    %v695 = vunpack.c.l.b16 %v145
    %v696 = vunpack.c.h.b16 %v145
    %v697 = vunpack.c.l.b16 %v146
    %v698 = vunpack.c.h.b16 %v146
    %v699 = vunpack.c.l.b16 %v147
    %v700 = vunpack.c.h.b16 %v147
    %v701 = vunpack.c.l.b16 %v148
    %v702 = vunpack.c.h.b16 %v148
    %v703 = vunpack.c.l.b16 %v149
    %v704 = vunpack.c.h.b16 %v149
    %v705 = vunpack.c.l.b16 %v150
    %v706 = vunpack.c.h.b16 %v150
    %v707 = vunpack.c.l.b16 %v151
    %v708 = vunpack.c.h.b16 %v151
    %v709 = vunpack.c.l.b16 %v152
    %v710 = vunpack.c.h.b16 %v152
    %v711 = vunpack.c.l.b16 %v153
    %v712 = vunpack.c.h.b16 %v153
    %v713 = vunpack.c.l.b16 %v154
    %v714 = vunpack.c.h.b16 %v154
    %v715 = vunpack.c.l.b16 %v155
    %v716 = vunpack.c.h.b16 %v155
    %v717 = vunpack.c.l.b16 %v156
    %v718 = vunpack.c.h.b16 %v156
    %v719 = vunpack.c.l.b16 %v157
    %v720 = vunpack.c.h.b16 %v157
    %v721 = vunpack.c.l.b16 %v158
    %v722 = vunpack.c.h.b16 %v158
    %v723 = vunpack.c.l.b16 %v159
    %v724 = vunpack.c.h.b16 %v159
    %v725 = vunpack.c.l.b16 %v160
    %v726 = vunpack.c.h.b16 %v160
    %v727 = vunpack.c.l.b16 %v161
    %v728 = vunpack.c.h.b16 %v161
    %v729 = vunpack.c.l.b16 %v162
    %v730 = vunpack.c.h.b16 %v162
    %v731 = vunpack.c.l.b16 %v163
    %v732 = vunpack.c.h.b16 %v163
    %v733 = vunpack.c.l.b16 %v164
    %v734 = vunpack.c.h.b16 %v164
    %v735 = vunpack.c.l.b16 %v165
    %v736 = vunpack.c.h.b16 %v165
    %v737 = vunpack.c.l.b16 %v166
    %v738 = vunpack.c.h.b16 %v166
    %v739 = vunpack.c.l.b16 %v167
    %v740 = vunpack.c.h.b16 %v167
    %v741 = vunpack.c.l.b16 %v168
    %v742 = vunpack.c.h.b16 %v168
    %v743 = vunpack.c.l.b16 %v169
    %v744 = vunpack.c.h.b16 %v169
    %v745 = vunpack.c.l.b16 %v170
    %v746 = vunpack.c.h.b16 %v170
    %v747 = vunpack.c.l.b16 %v171
    %v748 = vunpack.c.h.b16 %v171
    %v749 = vunpack.c.l.b16 %v172
    %v750 = vunpack.c.h.b16 %v172
    %v751 = vunpack.c.l.b16 %v173
    %v752 = vunpack.c.h.b16 %v173
    %v753 = vunpack.c.l.b16 %v174
    %v754 = vunpack.c.h.b16 %v174
    %v755 = vunpack.c.l.b16 %v175
    %v756 = vunpack.c.h.b16 %v175
    %v757 = vunpack.c.l.b16 %v176
    %v758 = vunpack.c.h.b16 %v176
    %v759 = vunpack.c.l.b16 %v177
    %v760 = vunpack.c.h.b16 %v177
    %v761 = vunpack.c.l.b16 %v178
    %v762 = vunpack.c.h.b16 %v178
    %v763 = vunpack.c.l.b16 %v179
    %v764 = vunpack.c.h.b16 %v179
    %v765 = vunpack.c.l.b16 %v180
    %v766 = vunpack.c.h.b16 %v180
    %v767 = vunpack.c.l.b16 %v181
    %v768 = vunpack.c.h.b16 %v181
    %v769 = vunpack.c.l.b16 %v182
    %v770 = vunpack.c.h.b16 %v182
    %v771 = vunpack.c.l.b16 %v183
    %v772 = vunpack.c.h.b16 %v183
    %v773 = vunpack.c.l.b16 %v184
    %v774 = vunpack.c.h.b16 %v184
    %v775 = vunpack.c.l.b16 %v185
    %v776 = vunpack.c.h.b16 %v185
    %v777 = vunpack.c.l.b16 %v186
    %v778 = vunpack.c.h.b16 %v186
    %v779 = vunpack.c.l.b16 %v187
    %v780 = vunpack.c.h.b16 %v187
    %v781 = vunpack.c.l.b16 %v188
    %v782 = vunpack.c.h.b16 %v188
    %v783 = vunpack.c.l.b16 %v189
    %v784 = vunpack.c.h.b16 %v189
    %v785 = vunpack.c.l.b16 %v190
    %v786 = vunpack.c.h.b16 %v190
    %v787 = vunpack.c.l.b16 %v191
    %v788 = vunpack.c.h.b16 %v191
    %v789 = vunpack.c.l.b16 %v192
    %v790 = vunpack.c.h.b16 %v192
    %v791 = vunpack.c.l.b16 %v193
    %v792 = vunpack.c.h.b16 %v193
    %v793 = vunpack.c.l.b16 %v194
    %v794 = vunpack.c.h.b16 %v194
    %v795 = vunpack.c.l.b16 %v195
    %v796 = vunpack.c.h.b16 %v195
    %v797 = vunpack.c.l.b16 %v196
    %v798 = vunpack.c.h.b16 %v196
    %v799 = vunpack.c.l.b16 %v197
    %v800 = vunpack.c.h.b16 %v197
    %v801 = vunpack.c.l.b16 %v198
    %v802 = vunpack.c.h.b16 %v198
    %v803 = vunpack.c.l.b16 %v199
    %v804 = vunpack.c.h.b16 %v199
    %v805 = vunpack.c.l.b16 %v200
    %v806 = vunpack.c.h.b16 %v200
    %v807 = vunpack.c.l.b16 %v201
    %v808 = vunpack.c.h.b16 %v201
    %v809 = vunpack.c.l.b16 %v202
    %v810 = vunpack.c.h.b16 %v202
    %v811 = vunpack.c.l.b16 %v203
    %v812 = vunpack.c.h.b16 %v203
    %v813 = vunpack.c.l.b16 %v204
    %v814 = vunpack.c.h.b16 %v204
    %v815 = vunpack.c.l.b16 %v205
    %v816 = vunpack.c.h.b16 %v205
    %v817 = vunpack.c.l.b16 %v206
    %v818 = vunpack.c.h.b16 %v206
    %v819 = vunpack.c.l.b16 %v207
    %v820 = vunpack.c.h.b16 %v207
    %v821 = vunpack.c.l.b16 %v208
    %v822 = vunpack.c.h.b16 %v208
    %v823 = vunpack.c.l.b16 %v209
    %v824 = vunpack.c.h.b16 %v209
    %v825 = vunpack.c.l.b16 %v210
    %v826 = vunpack.c.h.b16 %v210
    %v827 = vunpack.c.l.b16 %v211
    %v828 = vunpack.c.h.b16 %v211
    %v829 = vunpack.c.l.b16 %v212
    %v830 = vunpack.c.h.b16 %v212
    %v831 = vunpack.c.l.b16 %v213
    %v832 = vunpack.c.h.b16 %v213
    %v833 = vunpack.c.l.b16 %v214
    %v834 = vunpack.c.h.b16 %v214
    %v835 = vunpack.c.l.b16 %v215
    %v836 = vunpack.c.h.b16 %v215
    %v837 = vunpack.c.l.b16 %v216
    %v838 = vunpack.c.h.b16 %v216
    %v839 = vunpack.c.l.b16 %v217
    %v840 = vunpack.c.h.b16 %v217
    %v841 = vunpack.c.l.b16 %v218
    %v842 = vunpack.c.h.b16 %v218
    %v843 = vunpack.c.l.b16 %v219
    %v844 = vunpack.c.h.b16 %v219
    %v845 = vunpack.c.l.b16 %v220
    %v846 = vunpack.c.h.b16 %v220
    %v847 = vunpack.c.l.b16 %v221
    %v848 = vunpack.c.h.b16 %v221
    %v849 = vunpack.c.l.b16 %v222
    %v850 = vunpack.c.h.b16 %v222
    %v851 = vunpack.c.l.b16 %v223
    %v852 = vunpack.c.h.b16 %v223
    %v853 = vunpack.c.l.b16 %v224
    %v854 = vunpack.c.h.b16 %v224
    %v855 = vunpack.c.l.b16 %v225
    %v856 = vunpack.c.h.b16 %v225
    %v857 = vunpack.c.l.b16 %v226
    %v858 = vunpack.c.h.b16 %v226
    %v859 = vunpack.c.l.b16 %v227
    %v860 = vunpack.c.h.b16 %v227
    %v861 = vunpack.c.l.b16 %v228
    %v862 = vunpack.c.h.b16 %v228
    %v863 = vunpack.c.l.b16 %v229
    %v864 = vunpack.c.h.b16 %v229
    %v865 = vunpack.c.l.b16 %v230
    %v866 = vunpack.c.h.b16 %v230
    %v867 = vunpack.c.l.b16 %v231
    %v868 = vunpack.c.h.b16 %v231
    %v869 = vunpack.c.l.b16 %v232
    %v870 = vunpack.c.h.b16 %v232
    %v871 = vunpack.c.l.b16 %v233
    %v872 = vunpack.c.h.b16 %v233
    %v873 = vunpack.c.l.b16 %v234
    %v874 = vunpack.c.h.b16 %v234
    %v875 = vunpack.c.l.b16 %v235
    %v876 = vunpack.c.h.b16 %v235
    %v877 = vunpack.c.l.b16 %v236
    %v878 = vunpack.c.h.b16 %v236
    %v879 = vunpack.c.l.b16 %v237
    %v880 = vunpack.c.h.b16 %v237
    %v881 = vunpack.c.l.b16 %v238
    %v882 = vunpack.c.h.b16 %v238
    %v883 = vunpack.c.l.b16 %v239
    %v884 = vunpack.c.h.b16 %v239
    %v885 = vunpack.c.l.b16 %v240
    %v886 = vunpack.c.h.b16 %v240
    %v887 = vunpack.c.l.b16 %v241
    %v888 = vunpack.c.h.b16 %v241
    %v889 = vunpack.c.l.b16 %v242
    %v890 = vunpack.c.h.b16 %v242
    %v891 = vunpack.c.l.b16 %v243
    %v892 = vunpack.c.h.b16 %v243
    %v893 = vunpack.c.l.b16 %v244
    %v894 = vunpack.c.h.b16 %v244
    %v895 = vunpack.c.l.b16 %v245
    %v896 = vunpack.c.h.b16 %v245
    %v897 = vunpack.c.l.b16 %v246
    %v898 = vunpack.c.h.b16 %v246
    %v899 = vunpack.c.l.b16 %v247
    %v900 = vunpack.c.h.b16 %v247
    %v901 = vunpack.c.l.b16 %v248
    %v902 = vunpack.c.h.b16 %v248
    %v903 = vunpack.c.l.b16 %v249
    %v904 = vunpack.c.h.b16 %v249
    %v905 = vunpack.c.l.b16 %v250
    %v906 = vunpack.c.h.b16 %v250
    %v907 = vunpack.c.l.b16 %v251
    %v908 = vunpack.c.h.b16 %v251
    %v909 = vunpack.c.l.b16 %v252
    %v910 = vunpack.c.h.b16 %v252
    %v911 = vunpack.c.l.b16 %v253
    %v912 = vunpack.c.h.b16 %v253
    %v913 = vunpack.c.l.b16 %v254
    %v914 = vunpack.c.h.b16 %v254
    %v915 = vunpack.c.l.b16 %v255
    %v916 = vunpack.c.h.b16 %v255
    %v917 = vunpack.c.l.b16 %v256
    %v918 = vunpack.c.h.b16 %v256
    %v919 = vunpack.c.l.b16 %v257
    %v920 = vunpack.c.h.b16 %v257
    %v921 = vunpack.c.l.b16 %v258
    %v922 = vunpack.c.h.b16 %v258
    %v923 = vunpack.c.l.b16 %v259
    %v924 = vunpack.c.h.b16 %v259
    %v925 = vunpack.c.l.b16 %v260
    %v926 = vunpack.c.h.b16 %v260
    %v927 = vunpack.c.l.b16 %v261
    %v928 = vunpack.c.h.b16 %v261
    %v929 = vunpack.c.l.b16 %v262
    %v930 = vunpack.c.h.b16 %v262
    %v931 = vunpack.c.l.b16 %v263
    %v932 = vunpack.c.h.b16 %v263
    %v933 = vunpack.c.l.b16 %v264
    %v934 = vunpack.c.h.b16 %v264
    %v935 = vunpack.c.l.b16 %v265
    %v936 = vunpack.c.h.b16 %v265
    %v937 = vunpack.c.l.b16 %v266
    %v938 = vunpack.c.h.b16 %v266
    %v939 = vunpack.c.l.b16 %v267
    %v940 = vunpack.c.h.b16 %v267
    %v941 = vunpack.c.l.b16 %v268
    %v942 = vunpack.c.h.b16 %v268
    %v943 = vunpack.c.l.b16 %v269
    %v944 = vunpack.c.h.b16 %v269
    %v945 = vunpack.c.l.b16 %v270
    %v946 = vunpack.c.h.b16 %v270
    %v947 = vunpack.c.l.b16 %v271
    %v948 = vunpack.c.h.b16 %v271
    %v949 = vunpack.c.l.b16 %v272
    %v950 = vunpack.c.h.b16 %v272
    %v951 = vunpack.c.l.b16 %v273
    %v952 = vunpack.c.h.b16 %v273
    %v953 = vunpack.c.l.b16 %v274
    %v954 = vunpack.c.h.b16 %v274
    %v955 = vunpack.c.l.b16 %v275
    %v956 = vunpack.c.h.b16 %v275
    %v957 = vunpack.c.l.b16 %v276
    %v958 = vunpack.c.h.b16 %v276
    %v959 = vunpack.c.l.b16 %v277
    %v960 = vunpack.c.h.b16 %v277
    %v961 = vunpack.c.l.b16 %v278
    %v962 = vunpack.c.h.b16 %v278
    %v963 = vunpack.c.l.b16 %v279
    %v964 = vunpack.c.h.b16 %v279
    %v965 = vunpack.c.l.b16 %v280
    %v966 = vunpack.c.h.b16 %v280
    %v967 = vunpack.c.l.b16 %v281
    %v968 = vunpack.c.h.b16 %v281
    %v969 = vunpack.c.l.b16 %v282
    %v970 = vunpack.c.h.b16 %v282
    %v971 = vunpack.c.l.b16 %v283
    %v972 = vunpack.c.h.b16 %v283
    %v973 = vunpack.c.l.b16 %v284
    %v974 = vunpack.c.h.b16 %v284
    %v975 = vunpack.c.l.b16 %v285
    %v976 = vunpack.c.h.b16 %v285
    %v977 = vunpack.c.l.b16 %v286
    %v978 = vunpack.c.h.b16 %v286
    %v979 = vunpack.c.l.b16 %v287
    %v980 = vunpack.c.h.b16 %v287
    %v981 = vunpack.c.l.b16 %v288
    %v982 = vunpack.c.h.b16 %v288
    %v983 = vunpack.c.l.b16 %v289
    %v984 = vunpack.c.h.b16 %v289
    %v985 = vunpack.c.l.b16 %v290
    %v986 = vunpack.c.h.b16 %v290
    %v987 = vunpack.c.l.b16 %v291
    %v988 = vunpack.c.h.b16 %v291
    %v989 = vunpack.c.l.b16 %v292
    %v990 = vunpack.c.h.b16 %v292
    %v991 = vunpack.c.l.b16 %v293
    %v992 = vunpack.c.h.b16 %v293
    %v993 = vunpack.c.l.b16 %v294
    %v994 = vunpack.c.h.b16 %v294
    %v995 = vunpack.c.l.b16 %v295
    %v996 = vunpack.c.h.b16 %v295
    %v997 = vunpack.c.l.b16 %v296
    %v998 = vunpack.c.h.b16 %v296
    %v999 = vunpack.c.l.b16 %v297
    %v1000 = vunpack.c.h.b16 %v297
    %v1001 = vunpack.c.l.b16 %v298
    %v1002 = vunpack.c.h.b16 %v298
    %v1003 = vunpack.c.l.b16 %v299
    %v1004 = vunpack.c.h.b16 %v299
    %v1005 = vunpack.c.l.b16 %v300
    %v1006 = vunpack.c.h.b16 %v300
    %v1007 = vunpack.c.l.b16 %v301
    %v1008 = vunpack.c.h.b16 %v301
    %v1009 = vunpack.c.l.b16 %v302
    %v1010 = vunpack.c.h.b16 %v302
    %v1011 = vunpack.c.l.b16 %v303
    %v1012 = vunpack.c.h.b16 %v303
    %v1013 = vunpack.c.l.b16 %v304
    %v1014 = vunpack.c.h.b16 %v304
    %v1015 = vunpack.c.l.b16 %v305
    %v1016 = vunpack.c.h.b16 %v305
    %v1017 = vunpack.c.l.b16 %v306
    %v1018 = vunpack.c.h.b16 %v306
    %v1019 = vunpack.c.l.b16 %v307
    %v1020 = vunpack.c.h.b16 %v307
    %v1021 = vunpack.c.l.b16 %v308
    %v1022 = vunpack.c.h.b16 %v308
    %v1023 = vunpack.c.l.b16 %v309
    %v1024 = vunpack.c.h.b16 %v309
    %v1025 = vunpack.c.l.b16 %v310
    %v1026 = vunpack.c.h.b16 %v310
    %v1027 = vunpack.c.l.b16 %v311
    %v1028 = vunpack.c.h.b16 %v311
    %v1029 = vunpack.c.l.b16 %v312
    %v1030 = vunpack.c.h.b16 %v312
    %v1031 = vunpack.c.l.b16 %v313
    %v1032 = vunpack.c.h.b16 %v313
    %v1033 = vunpack.c.l.b16 %v314
    %v1034 = vunpack.c.h.b16 %v314
    %v1035 = vunpack.c.l.b16 %v315
    %v1036 = vunpack.c.h.b16 %v315
    %v1037 = vunpack.c.l.b16 %v316
    %v1038 = vunpack.c.h.b16 %v316
    %v1039 = vunpack.c.l.b16 %v317
    %v1040 = vunpack.c.h.b16 %v317
    %v1041 = vunpack.c.l.b16 %v318
    %v1042 = vunpack.c.h.b16 %v318
    %v1043 = vunpack.c.l.b16 %v319
    %v1044 = vunpack.c.h.b16 %v319
    %v1045 = vunpack.c.l.b16 %v320
    %v1046 = vunpack.c.h.b16 %v320
    %v1047 = vunpack.c.l.b16 %v321
    %v1048 = vunpack.c.h.b16 %v321
    %v1049 = vunpack.c.l.b16 %v322
    %v1050 = vunpack.c.h.b16 %v322
    %v1051 = vunpack.c.l.b16 %v323
    %v1052 = vunpack.c.h.b16 %v323
    %v1053 = vunpack.c.l.b16 %v324
    %v1054 = vunpack.c.h.b16 %v324
    %v1055 = vunpack.c.l.b16 %v325
    %v1056 = vunpack.c.h.b16 %v325
    %v1057 = vunpack.c.l.b16 %v326
    %v1058 = vunpack.c.h.b16 %v326
    %v1059 = vunpack.c.l.b16 %v327
    %v1060 = vunpack.c.h.b16 %v327
    %v1061 = vunpack.c.l.b16 %v328
    %v1062 = vunpack.c.h.b16 %v328
    %v1063 = vunpack.c.l.b16 %v329
    %v1064 = vunpack.c.h.b16 %v329
    %v1065 = vunpack.c.l.b16 %v330
    %v1066 = vunpack.c.h.b16 %v330
    %v1067 = vunpack.c.l.b16 %v331
    %v1068 = vunpack.c.h.b16 %v331
    %v1069 = vunpack.c.l.b16 %v332
    %v1070 = vunpack.c.h.b16 %v332
    %v1071 = vunpack.c.l.b16 %v333
    %v1072 = vunpack.c.h.b16 %v333
    %v1073 = vunpack.c.l.b16 %v334
    %v1074 = vunpack.c.h.b16 %v334
    %v1075 = vunpack.c.l.b16 %v335
    %v1076 = vunpack.c.h.b16 %v335
    %v1077 = vunpack.c.l.b16 %v336
    %v1078 = vunpack.c.h.b16 %v336
    %v1079 = vunpack.c.l.b16 %v337
    %v1080 = vunpack.c.h.b16 %v337
    %v1081 = vunpack.c.l.b16 %v338
    %v1082 = vunpack.c.h.b16 %v338
    %v1083 = vunpack.c.l.b16 %v339
    %v1084 = vunpack.c.h.b16 %v339
    %v1085 = vunpack.c.l.b16 %v340
    %v1086 = vunpack.c.h.b16 %v340
    %v1087 = vunpack.c.l.b16 %v341
    %v1088 = vunpack.c.h.b16 %v341
    %v1089 = vunpack.c.l.b16 %v342
    %v1090 = vunpack.c.h.b16 %v342
    %v1091 = vunpack.c.l.b16 %v343
    %v1092 = vunpack.c.h.b16 %v343
    %v1093 = vunpack.c.l.b16 %v344
    %v1094 = vunpack.c.h.b16 %v344
    %v1095 = vunpack.c.l.b16 %v345
    %v1096 = vunpack.c.h.b16 %v345
    %v1097 = vunpack.c.l.b16 %v346
    %v1098 = vunpack.c.h.b16 %v346
    %v1099 = vunpack.c.l.b16 %v347
    %v1100 = vunpack.c.h.b16 %v347
    %v1101 = vunpack.c.l.b16 %v348
    %v1102 = vunpack.c.h.b16 %v348
    %v1103 = vunpack.c.l.b16 %v349
    %v1104 = vunpack.c.h.b16 %v349
    %v1105 = vunpack.c.l.b16 %v350
    %v1106 = vunpack.c.h.b16 %v350
    %v1107 = vunpack.c.l.b16 %v351
    %v1108 = vunpack.c.h.b16 %v351
    %v1109 = vunpack.c.l.b16 %v352
    %v1110 = vunpack.c.h.b16 %v352
    %v1111 = vunpack.c.l.b16 %v353
    %v1112 = vunpack.c.h.b16 %v353
    %v1113 = vunpack.c.l.b16 %v354
    %v1114 = vunpack.c.h.b16 %v354
    %v1115 = vunpack.c.l.b16 %v355
    %v1116 = vunpack.c.h.b16 %v355
    %v1117 = vunpack.c.l.b16 %v356
    %v1118 = vunpack.c.h.b16 %v356
    %v1119 = vunpack.c.l.b16 %v357
    %v1120 = vunpack.c.h.b16 %v357
    %v1121 = vunpack.c.l.b16 %v358
    %v1122 = vunpack.c.h.b16 %v358
    %v1123 = vunpack.c.l.b16 %v359
    %v1124 = vunpack.c.h.b16 %v359
    %v1125 = vunpack.c.l.b16 %v360
    %v1126 = vunpack.c.h.b16 %v360
    %v1127 = vunpack.c.l.b16 %v361
    %v1128 = vunpack.c.h.b16 %v361
    %v1129 = vunpack.c.l.b16 %v362
    %v1130 = vunpack.c.h.b16 %v362
    %v1131 = vunpack.c.l.b16 %v363
    %v1132 = vunpack.c.h.b16 %v363
    %v1133 = vunpack.c.l.b16 %v364
    %v1134 = vunpack.c.h.b16 %v364
    %v1135 = vunpack.c.l.b16 %v365
    %v1136 = vunpack.c.h.b16 %v365
    %v1137 = vunpack.c.l.b16 %v366
    %v1138 = vunpack.c.h.b16 %v366
    %v1139 = vunpack.c.l.b16 %v367
    %v1140 = vunpack.c.h.b16 %v367
    %v1141 = vunpack.c.l.b16 %v368
    %v1142 = vunpack.c.h.b16 %v368
    %v1143 = vunpack.c.l.b16 %v369
    %v1144 = vunpack.c.h.b16 %v369
    %v1145 = vunpack.c.l.b16 %v370
    %v1146 = vunpack.c.h.b16 %v370
    %v1147 = vunpack.c.l.b16 %v371
    %v1148 = vunpack.c.h.b16 %v371
    %v1149 = vunpack.c.l.b16 %v372
    %v1150 = vunpack.c.h.b16 %v372
    %v1151 = vpack.c.b16 %v643, %v639
    %v1152 = vpack.c.b16 %v644, %v640
    %v1153 = vpack.c.b16 %v645, %v641
    %v1154 = vpack.c.b16 %v646, %v642
    %v1155 = vpack.c.b16 %v651, %v647
    %v1156 = vpack.c.b16 %v652, %v648
    %v1157 = vpack.c.b16 %v653, %v649
    %v1158 = vpack.c.b16 %v654, %v650
    %v1159 = vpack.c.b16 %v659, %v655
    %v1160 = vpack.c.b16 %v660, %v656
    %v1161 = vpack.c.b16 %v661, %v657
    %v1162 = vpack.c.b16 %v662, %v658
    %v1163 = vpack.c.b16 %v667, %v663
    %v1164 = vpack.c.b16 %v668, %v664
    %v1165 = vpack.c.b16 %v669, %v665
    %v1166 = vpack.c.b16 %v670, %v666
    %v1167 = vpack.c.b16 %v675, %v671
    %v1168 = vpack.c.b16 %v676, %v672
    %v1169 = vpack.c.b16 %v677, %v673
    %v1170 = vpack.c.b16 %v678, %v674
    %v1171 = vpack.c.b16 %v683, %v679
    %v1172 = vpack.c.b16 %v684, %v680
    %v1173 = vpack.c.b16 %v685, %v681
    %v1174 = vpack.c.b16 %v686, %v682
    %v1175 = vpack.c.b16 %v691, %v687
    %v1176 = vpack.c.b16 %v692, %v688
    %v1177 = vpack.c.b16 %v693, %v689
    %v1178 = vpack.c.b16 %v694, %v690
    %v1179 = vpack.c.b16 %v699, %v695
    %v1180 = vpack.c.b16 %v700, %v696
    %v1181 = vpack.c.b16 %v701, %v697
    %v1182 = vpack.c.b16 %v702, %v698
    %v1183 = vpack.c.b16 %v707, %v703
    %v1184 = vpack.c.b16 %v708, %v704
    %v1185 = vpack.c.b16 %v709, %v705
    %v1186 = vpack.c.b16 %v710, %v706
    %v1187 = vpack.c.b16 %v715, %v711
    %v1188 = vpack.c.b16 %v716, %v712
    %v1189 = vpack.c.b16 %v717, %v713
    %v1190 = vpack.c.b16 %v718, %v714
    %v1191 = vpack.c.b16 %v723, %v719
    %v1192 = vpack.c.b16 %v724, %v720
    %v1193 = vpack.c.b16 %v725, %v721
    %v1194 = vpack.c.b16 %v726, %v722
    %v1195 = vpack.c.b16 %v731, %v727
    %v1196 = vpack.c.b16 %v732, %v728
    %v1197 = vpack.c.b16 %v733, %v729
    %v1198 = vpack.c.b16 %v734, %v730
    %v1199 = vpack.c.b16 %v739, %v735
    %v1200 = vpack.c.b16 %v740, %v736
    %v1201 = vpack.c.b16 %v741, %v737
    %v1202 = vpack.c.b16 %v742, %v738
    %v1203 = vpack.c.b16 %v747, %v743
    %v1204 = vpack.c.b16 %v748, %v744
    %v1205 = vpack.c.b16 %v749, %v745
    %v1206 = vpack.c.b16 %v750, %v746
    %v1207 = vpack.c.b16 %v755, %v751
    %v1208 = vpack.c.b16 %v756, %v752
    %v1209 = vpack.c.b16 %v757, %v753
    %v1210 = vpack.c.b16 %v758, %v754
    %v1211 = vpack.c.b16 %v763, %v759
    %v1212 = vpack.c.b16 %v764, %v760
    %v1213 = vpack.c.b16 %v765, %v761
    %v1214 = vpack.c.b16 %v766, %v762
    %v1215 = vpack.c.b16 %v771, %v767
    %v1216 = vpack.c.b16 %v772, %v768
    %v1217 = vpack.c.b16 %v773, %v769
    %v1218 = vpack.c.b16 %v774, %v770
    %v1219 = vpack.c.b16 %v779, %v775
    %v1220 = vpack.c.b16 %v780, %v776
    %v1221 = vpack.c.b16 %v781, %v777
    %v1222 = vpack.c.b16 %v782, %v778
    %v1223 = vpack.c.b16 %v787, %v783
    %v1224 = vpack.c.b16 %v788, %v784
    %v1225 = vpack.c.b16 %v789, %v785
    %v1226 = vpack.c.b16 %v790, %v786
    %v1227 = vpack.c.b16 %v795, %v791
    %v1228 = vpack.c.b16 %v796, %v792
    %v1229 = vpack.c.b16 %v797, %v793
    %v1230 = vpack.c.b16 %v798, %v794
    %v1231 = vpack.c.b16 %v803, %v799
    %v1232 = vpack.c.b16 %v804, %v800
    %v1233 = vpack.c.b16 %v805, %v801
    %v1234 = vpack.c.b16 %v806, %v802
    %v1235 = vpack.c.b16 %v811, %v807
    %v1236 = vpack.c.b16 %v812, %v808
    %v1237 = vpack.c.b16 %v813, %v809
    %v1238 = vpack.c.b16 %v814, %v810
    %v1239 = vpack.c.b16 %v819, %v815
    %v1240 = vpack.c.b16 %v820, %v816
    %v1241 = vpack.c.b16 %v821, %v817
    %v1242 = vpack.c.b16 %v822, %v818
    %v1243 = vpack.c.b16 %v827, %v823
    %v1244 = vpack.c.b16 %v828, %v824
    %v1245 = vpack.c.b16 %v829, %v825
    %v1246 = vpack.c.b16 %v830, %v826
    %v1247 = vpack.c.b16 %v835, %v831
    %v1248 = vpack.c.b16 %v836, %v832
    %v1249 = vpack.c.b16 %v837, %v833
    %v1250 = vpack.c.b16 %v838, %v834
    %v1251 = vpack.c.b16 %v843, %v839
    %v1252 = vpack.c.b16 %v844, %v840
    %v1253 = vpack.c.b16 %v845, %v841
    %v1254 = vpack.c.b16 %v846, %v842
    %v1255 = vpack.c.b16 %v851, %v847
    %v1256 = vpack.c.b16 %v852, %v848
    %v1257 = vpack.c.b16 %v853, %v849
    %v1258 = vpack.c.b16 %v854, %v850
    %v1259 = vpack.c.b16 %v859, %v855
    %v1260 = vpack.c.b16 %v860, %v856
    %v1261 = vpack.c.b16 %v861, %v857
    %v1262 = vpack.c.b16 %v862, %v858
    %v1263 = vpack.c.b16 %v867, %v863
    %v1264 = vpack.c.b16 %v868, %v864
    %v1265 = vpack.c.b16 %v869, %v865
    %v1266 = vpack.c.b16 %v870, %v866
    %v1267 = vpack.c.b16 %v875, %v871
    %v1268 = vpack.c.b16 %v876, %v872
    %v1269 = vpack.c.b16 %v877, %v873
    %v1270 = vpack.c.b16 %v878, %v874
    %v1271 = vpack.c.b16 %v883, %v879
    %v1272 = vpack.c.b16 %v884, %v880
    %v1273 = vpack.c.b16 %v885, %v881
    %v1274 = vpack.c.b16 %v886, %v882
    %v1275 = vpack.c.b16 %v891, %v887
    %v1276 = vpack.c.b16 %v892, %v888
    %v1277 = vpack.c.b16 %v893, %v889
    %v1278 = vpack.c.b16 %v894, %v890
    %v1279 = vpack.c.b16 %v899, %v895
    %v1280 = vpack.c.b16 %v900, %v896
    %v1281 = vpack.c.b16 %v901, %v897
    %v1282 = vpack.c.b16 %v902, %v898
    %v1283 = vpack.c.b16 %v907, %v903
    %v1284 = vpack.c.b16 %v908, %v904
    %v1285 = vpack.c.b16 %v909, %v905
    %v1286 = vpack.c.b16 %v910, %v906
    %v1287 = vpack.c.b16 %v915, %v911
    %v1288 = vpack.c.b16 %v916, %v912
    %v1289 = vpack.c.b16 %v917, %v913
    %v1290 = vpack.c.b16 %v918, %v914
    %v1291 = vpack.c.b16 %v923, %v919
    %v1292 = vpack.c.b16 %v924, %v920
    %v1293 = vpack.c.b16 %v925, %v921
    %v1294 = vpack.c.b16 %v926, %v922
    %v1295 = vpack.c.b16 %v931, %v927
    %v1296 = vpack.c.b16 %v932, %v928
    %v1297 = vpack.c.b16 %v933, %v929
    %v1298 = vpack.c.b16 %v934, %v930
    %v1299 = vpack.c.b16 %v939, %v935
    %v1300 = vpack.c.b16 %v940, %v936
    %v1301 = vpack.c.b16 %v941, %v937
    %v1302 = vpack.c.b16 %v942, %v938
    %v1303 = vpack.c.b16 %v947, %v943
    %v1304 = vpack.c.b16 %v948, %v944
    %v1305 = vpack.c.b16 %v949, %v945
    %v1306 = vpack.c.b16 %v950, %v946
    %v1307 = vpack.c.b16 %v955, %v951
    %v1308 = vpack.c.b16 %v956, %v952
    %v1309 = vpack.c.b16 %v957, %v953
    %v1310 = vpack.c.b16 %v958, %v954
    %v1311 = vpack.c.b16 %v963, %v959
    %v1312 = vpack.c.b16 %v964, %v960
    %v1313 = vpack.c.b16 %v965, %v961
    %v1314 = vpack.c.b16 %v966, %v962
    %v1315 = vpack.c.b16 %v971, %v967
    %v1316 = vpack.c.b16 %v972, %v968
    %v1317 = vpack.c.b16 %v973, %v969
    %v1318 = vpack.c.b16 %v974, %v970
    %v1319 = vpack.c.b16 %v979, %v975
    %v1320 = vpack.c.b16 %v980, %v976
    %v1321 = vpack.c.b16 %v981, %v977
    %v1322 = vpack.c.b16 %v982, %v978
    %v1323 = vpack.c.b16 %v987, %v983
    %v1324 = vpack.c.b16 %v988, %v984
    %v1325 = vpack.c.b16 %v989, %v985
    %v1326 = vpack.c.b16 %v990, %v986
    %v1327 = vpack.c.b16 %v995, %v991
    %v1328 = vpack.c.b16 %v996, %v992
    %v1329 = vpack.c.b16 %v997, %v993
    %v1330 = vpack.c.b16 %v998, %v994
    %v1331 = vpack.c.b16 %v1003, %v999
    %v1332 = vpack.c.b16 %v1004, %v1000
    %v1333 = vpack.c.b16 %v1005, %v1001
    %v1334 = vpack.c.b16 %v1006, %v1002
    %v1335 = vpack.c.b16 %v1011, %v1007
    %v1336 = vpack.c.b16 %v1012, %v1008
    %v1337 = vpack.c.b16 %v1013, %v1009
    %v1338 = vpack.c.b16 %v1014, %v1010
    %v1339 = vpack.c.b16 %v1019, %v1015
    %v1340 = vpack.c.b16 %v1020, %v1016
    %v1341 = vpack.c.b16 %v1021, %v1017
    %v1342 = vpack.c.b16 %v1022, %v1018
    %v1343 = vpack.c.b16 %v1027, %v1023
    %v1344 = vpack.c.b16 %v1028, %v1024
    %v1345 = vpack.c.b16 %v1029, %v1025
    %v1346 = vpack.c.b16 %v1030, %v1026
    %v1347 = vpack.c.b16 %v1035, %v1031
    %v1348 = vpack.c.b16 %v1036, %v1032
    %v1349 = vpack.c.b16 %v1037, %v1033
    %v1350 = vpack.c.b16 %v1038, %v1034
    %v1351 = vpack.c.b16 %v1043, %v1039
    %v1352 = vpack.c.b16 %v1044, %v1040
    %v1353 = vpack.c.b16 %v1045, %v1041
    %v1354 = vpack.c.b16 %v1046, %v1042
    %v1355 = vpack.c.b16 %v1051, %v1047
    %v1356 = vpack.c.b16 %v1052, %v1048
    %v1357 = vpack.c.b16 %v1053, %v1049
    %v1358 = vpack.c.b16 %v1054, %v1050
    %v1359 = vpack.c.b16 %v1059, %v1055
    %v1360 = vpack.c.b16 %v1060, %v1056
    %v1361 = vpack.c.b16 %v1061, %v1057
    %v1362 = vpack.c.b16 %v1062, %v1058
    %v1363 = vpack.c.b16 %v1067, %v1063
    %v1364 = vpack.c.b16 %v1068, %v1064
    %v1365 = vpack.c.b16 %v1069, %v1065
    %v1366 = vpack.c.b16 %v1070, %v1066
    %v1367 = vpack.c.b16 %v1075, %v1071
    %v1368 = vpack.c.b16 %v1076, %v1072
    %v1369 = vpack.c.b16 %v1077, %v1073
    %v1370 = vpack.c.b16 %v1078, %v1074
    %v1371 = vpack.c.b16 %v1083, %v1079
    %v1372 = vpack.c.b16 %v1084, %v1080
    %v1373 = vpack.c.b16 %v1085, %v1081
    %v1374 = vpack.c.b16 %v1086, %v1082
    %v1375 = vpack.c.b16 %v1091, %v1087
    %v1376 = vpack.c.b16 %v1092, %v1088
    %v1377 = vpack.c.b16 %v1093, %v1089
    %v1378 = vpack.c.b16 %v1094, %v1090
    %v1379 = vpack.c.b16 %v1099, %v1095
    %v1380 = vpack.c.b16 %v1100, %v1096
    %v1381 = vpack.c.b16 %v1101, %v1097
    %v1382 = vpack.c.b16 %v1102, %v1098
    %v1383 = vpack.c.b16 %v1107, %v1103
    %v1384 = vpack.c.b16 %v1108, %v1104
    %v1385 = vpack.c.b16 %v1109, %v1105
    %v1386 = vpack.c.b16 %v1110, %v1106
    %v1387 = vpack.c.b16 %v1115, %v1111
    %v1388 = vpack.c.b16 %v1116, %v1112
    %v1389 = vpack.c.b16 %v1117, %v1113
    %v1390 = vpack.c.b16 %v1118, %v1114
    %v1391 = vpack.c.b16 %v1123, %v1119
    %v1392 = vpack.c.b16 %v1124, %v1120
    %v1393 = vpack.c.b16 %v1125, %v1121
    %v1394 = vpack.c.b16 %v1126, %v1122
    %v1395 = vpack.c.b16 %v1131, %v1127
    %v1396 = vpack.c.b16 %v1132, %v1128
    %v1397 = vpack.c.b16 %v1133, %v1129
    %v1398 = vpack.c.b16 %v1134, %v1130
    %v1399 = vpack.c.b16 %v1139, %v1135
    %v1400 = vpack.c.b16 %v1140, %v1136
    %v1401 = vpack.c.b16 %v1141, %v1137
    %v1402 = vpack.c.b16 %v1142, %v1138
    %v1403 = vpack.c.b16 %v1147, %v1143
    %v1404 = vpack.c.b16 %v1148, %v1144
    %v1405 = vpack.c.b16 %v1149, %v1145
    %v1406 = vpack.c.b16 %v1150, %v1146
    %1663 = vmatpush.bf16.msra.mxu0 %v1179
    %1664 = vmatpush.bf16.msra.mxu0 %v1175
    %1665 = vmatpush.bf16.msra.mxu0 %v1171
    %1666 = vmatpush.bf16.msra.mxu0 %v1167
    %1667 = vmatpush.bf16.msra.mxu0 %v1163
    %1668 = vmatpush.bf16.msra.mxu0 %v1159
    %1669 = vmatpush.bf16.msra.mxu0 %v1155
    %1670 = vmatpush.bf16.msra.mxu0 %v1151
    %1671 = vmatmul.bf16.gmra.mxu0 %v109
    %v1672 = vpop.f32.mrf.mxu0
    %v1673 = vadd.f32 %v375, %v1672
    %v1674 = vpop.f32.mrf.mxu0
    %1675 = vdwg.mxu0
    %1676 = vmatpush.bf16.msra.mxu0 %v1211
    %1677 = vmatpush.bf16.msra.mxu0 %v1207
    %1678 = vmatpush.bf16.msra.mxu0 %v1203
    %1679 = vmatpush.bf16.msra.mxu0 %v1199
    %1680 = vmatpush.bf16.msra.mxu0 %v1195
    %1681 = vmatpush.bf16.msra.mxu0 %v1191
    %1682 = vmatpush.bf16.msra.mxu0 %v1187
    %1683 = vmatpush.bf16.msra.mxu0 %v1183
    %1684 = vmatmul.bf16.gmra.mxu0 %v110
    %v1685 = vpop.f32.mrf.mxu0
    %v1686 = vadd.f32 %v1673, %v1685
    %v1687 = vpop.f32.mrf.mxu0
    %1688 = vdwg.mxu0
    %1689 = vmatpush.bf16.msra.mxu0 %v1243
    %1690 = vmatpush.bf16.msra.mxu0 %v1239
    %1691 = vmatpush.bf16.msra.mxu0 %v1235
    %1692 = vmatpush.bf16.msra.mxu0 %v1231
    %1693 = vmatpush.bf16.msra.mxu0 %v1227
    %1694 = vmatpush.bf16.msra.mxu0 %v1223
    %1695 = vmatpush.bf16.msra.mxu0 %v1219
    %1696 = vmatpush.bf16.msra.mxu0 %v1215
    %1697 = vmatmul.bf16.gmra.mxu0 %v111
    %v1698 = vpop.f32.mrf.mxu0
    %v1699 = vadd.f32 %v1686, %v1698
    %v1700 = vpop.f32.mrf.mxu0
    %1701 = vdwg.mxu0
    %1702 = vmatpush.bf16.msra.mxu0 %v1275
    %1703 = vmatpush.bf16.msra.mxu0 %v1271
    %1704 = vmatpush.bf16.msra.mxu0 %v1267
    %1705 = vmatpush.bf16.msra.mxu0 %v1263
    %1706 = vmatpush.bf16.msra.mxu0 %v1259
    %1707 = vmatpush.bf16.msra.mxu0 %v1255
    %1708 = vmatpush.bf16.msra.mxu0 %v1251
    %1709 = vmatpush.bf16.msra.mxu0 %v1247
    %1710 = vmatmul.bf16.gmra.mxu0 %v112
    %v1711 = vpop.f32.mrf.mxu0
    %v1712 = vadd.f32 %v1699, %v1711
    %v1713 = vpop.f32.mrf.mxu0
    %1714 = vdwg.mxu0
    %1715 = vmatpush.bf16.msra.mxu0 %v1307
    %1716 = vmatpush.bf16.msra.mxu0 %v1303
    %1717 = vmatpush.bf16.msra.mxu0 %v1299
    %1718 = vmatpush.bf16.msra.mxu0 %v1295
    %1719 = vmatpush.bf16.msra.mxu0 %v1291
    %1720 = vmatpush.bf16.msra.mxu0 %v1287
    %1721 = vmatpush.bf16.msra.mxu0 %v1283
    %1722 = vmatpush.bf16.msra.mxu0 %v1279
    %1723 = vmatmul.bf16.gmra.mxu0 %v113
    %v1724 = vpop.f32.mrf.mxu0
    %v1725 = vadd.f32 %v1712, %v1724
    %v1726 = vpop.f32.mrf.mxu0
    %1727 = vdwg.mxu0
    %1728 = vmatpush.bf16.msra.mxu0 %v1339
    %1729 = vmatpush.bf16.msra.mxu0 %v1335
    %1730 = vmatpush.bf16.msra.mxu0 %v1331
    %1731 = vmatpush.bf16.msra.mxu0 %v1327
    %1732 = vmatpush.bf16.msra.mxu0 %v1323
    %1733 = vmatpush.bf16.msra.mxu0 %v1319
    %1734 = vmatpush.bf16.msra.mxu0 %v1315
    %1735 = vmatpush.bf16.msra.mxu0 %v1311
    %1736 = vmatmul.bf16.gmra.mxu0 %v114
    %v1737 = vpop.f32.mrf.mxu0
    %v1738 = vadd.f32 %v1725, %v1737
    %v1739 = vpop.f32.mrf.mxu0
    %1740 = vdwg.mxu0
    %1741 = vmatpush.bf16.msra.mxu0 %v1371
    %1742 = vmatpush.bf16.msra.mxu0 %v1367
    %1743 = vmatpush.bf16.msra.mxu0 %v1363
    %1744 = vmatpush.bf16.msra.mxu0 %v1359
    %1745 = vmatpush.bf16.msra.mxu0 %v1355
    %1746 = vmatpush.bf16.msra.mxu0 %v1351
    %1747 = vmatpush.bf16.msra.mxu0 %v1347
    %1748 = vmatpush.bf16.msra.mxu0 %v1343
    %1749 = vmatmul.bf16.gmra.mxu0 %v115
    %v1750 = vpop.f32.mrf.mxu0
    %v1751 = vadd.f32 %v1738, %v1750
    %v1752 = vpop.f32.mrf.mxu0
    %1753 = vdwg.mxu0
    %1754 = vmatpush.bf16.msra.mxu0 %v1403
    %1755 = vmatpush.bf16.msra.mxu0 %v1399
    %1756 = vmatpush.bf16.msra.mxu0 %v1395
    %1757 = vmatpush.bf16.msra.mxu0 %v1391
    %1758 = vmatpush.bf16.msra.mxu0 %v1387
    %1759 = vmatpush.bf16.msra.mxu0 %v1383
    %1760 = vmatpush.bf16.msra.mxu0 %v1379
    %1761 = vmatpush.bf16.msra.mxu0 %v1375
    %1762 = vmatmul.bf16.gmra.mxu0 %v116
    %v1763 = vpop.f32.mrf.mxu0
    %v1764 = vadd.f32 %v1751, %v1763
    %v1765 = vpop.f32.mrf.mxu0
    %1766 = vdwg.mxu0
    %1767 = vmatpush.bf16.msra.mxu0 %v1180
    %1768 = vmatpush.bf16.msra.mxu0 %v1176
    %1769 = vmatpush.bf16.msra.mxu0 %v1172
    %1770 = vmatpush.bf16.msra.mxu0 %v1168
    %1771 = vmatpush.bf16.msra.mxu0 %v1164
    %1772 = vmatpush.bf16.msra.mxu0 %v1160
    %1773 = vmatpush.bf16.msra.mxu0 %v1156
    %1774 = vmatpush.bf16.msra.mxu0 %v1152
    %1775 = vmatmul.bf16.gmra.mxu0 %v109
    %v1776 = vpop.f32.mrf.mxu0
    %v1777 = vadd.f32 %v376, %v1776
    %v1778 = vpop.f32.mrf.mxu0
    %1779 = vdwg.mxu0
    %1780 = vmatpush.bf16.msra.mxu0 %v1212
    %1781 = vmatpush.bf16.msra.mxu0 %v1208
    %1782 = vmatpush.bf16.msra.mxu0 %v1204
    %1783 = vmatpush.bf16.msra.mxu0 %v1200
    %1784 = vmatpush.bf16.msra.mxu0 %v1196
    %1785 = vmatpush.bf16.msra.mxu0 %v1192
    %1786 = vmatpush.bf16.msra.mxu0 %v1188
    %1787 = vmatpush.bf16.msra.mxu0 %v1184
    %1788 = vmatmul.bf16.gmra.mxu0 %v110
    %v1789 = vpop.f32.mrf.mxu0
    %v1790 = vadd.f32 %v1777, %v1789
    %v1791 = vpop.f32.mrf.mxu0
    %1792 = vdwg.mxu0
    %1793 = vmatpush.bf16.msra.mxu0 %v1244
    %1794 = vmatpush.bf16.msra.mxu0 %v1240
    %1795 = vmatpush.bf16.msra.mxu0 %v1236
    %1796 = vmatpush.bf16.msra.mxu0 %v1232
    %1797 = vmatpush.bf16.msra.mxu0 %v1228
    %1798 = vmatpush.bf16.msra.mxu0 %v1224
    %1799 = vmatpush.bf16.msra.mxu0 %v1220
    %1800 = vmatpush.bf16.msra.mxu0 %v1216
    %1801 = vmatmul.bf16.gmra.mxu0 %v111
    %v1802 = vpop.f32.mrf.mxu0
    %v1803 = vadd.f32 %v1790, %v1802
    %v1804 = vpop.f32.mrf.mxu0
    %1805 = vdwg.mxu0
    %1806 = vmatpush.bf16.msra.mxu0 %v1276
    %1807 = vmatpush.bf16.msra.mxu0 %v1272
    %1808 = vmatpush.bf16.msra.mxu0 %v1268
    %1809 = vmatpush.bf16.msra.mxu0 %v1264
    %1810 = vmatpush.bf16.msra.mxu0 %v1260
    %1811 = vmatpush.bf16.msra.mxu0 %v1256
    %1812 = vmatpush.bf16.msra.mxu0 %v1252
    %1813 = vmatpush.bf16.msra.mxu0 %v1248
    %1814 = vmatmul.bf16.gmra.mxu0 %v112
    %v1815 = vpop.f32.mrf.mxu0
    %v1816 = vadd.f32 %v1803, %v1815
    %v1817 = vpop.f32.mrf.mxu0
    %1818 = vdwg.mxu0
    %1819 = vmatpush.bf16.msra.mxu0 %v1308
    %1820 = vmatpush.bf16.msra.mxu0 %v1304
    %1821 = vmatpush.bf16.msra.mxu0 %v1300
    %1822 = vmatpush.bf16.msra.mxu0 %v1296
    %1823 = vmatpush.bf16.msra.mxu0 %v1292
    %1824 = vmatpush.bf16.msra.mxu0 %v1288
    %1825 = vmatpush.bf16.msra.mxu0 %v1284
    %1826 = vmatpush.bf16.msra.mxu0 %v1280
    %1827 = vmatmul.bf16.gmra.mxu0 %v113
    %v1828 = vpop.f32.mrf.mxu0
    %v1829 = vadd.f32 %v1816, %v1828
    %v1830 = vpop.f32.mrf.mxu0
    %1831 = vdwg.mxu0
    %1832 = vmatpush.bf16.msra.mxu0 %v1340
    %1833 = vmatpush.bf16.msra.mxu0 %v1336
    %1834 = vmatpush.bf16.msra.mxu0 %v1332
    %1835 = vmatpush.bf16.msra.mxu0 %v1328
    %1836 = vmatpush.bf16.msra.mxu0 %v1324
    %1837 = vmatpush.bf16.msra.mxu0 %v1320
    %1838 = vmatpush.bf16.msra.mxu0 %v1316
    %1839 = vmatpush.bf16.msra.mxu0 %v1312
    %1840 = vmatmul.bf16.gmra.mxu0 %v114
    %v1841 = vpop.f32.mrf.mxu0
    %v1842 = vadd.f32 %v1829, %v1841
    %v1843 = vpop.f32.mrf.mxu0
    %1844 = vdwg.mxu0
    %1845 = vmatpush.bf16.msra.mxu0 %v1372
    %1846 = vmatpush.bf16.msra.mxu0 %v1368
    %1847 = vmatpush.bf16.msra.mxu0 %v1364
    %1848 = vmatpush.bf16.msra.mxu0 %v1360
    %1849 = vmatpush.bf16.msra.mxu0 %v1356
    %1850 = vmatpush.bf16.msra.mxu0 %v1352
    %1851 = vmatpush.bf16.msra.mxu0 %v1348
    %1852 = vmatpush.bf16.msra.mxu0 %v1344
    %1853 = vmatmul.bf16.gmra.mxu0 %v115
    %v1854 = vpop.f32.mrf.mxu0
    %v1855 = vadd.f32 %v1842, %v1854
    %v1856 = vpop.f32.mrf.mxu0
    %1857 = vdwg.mxu0
    %1858 = vmatpush.bf16.msra.mxu0 %v1404
    %1859 = vmatpush.bf16.msra.mxu0 %v1400
    %1860 = vmatpush.bf16.msra.mxu0 %v1396
    %1861 = vmatpush.bf16.msra.mxu0 %v1392
    %1862 = vmatpush.bf16.msra.mxu0 %v1388
    %1863 = vmatpush.bf16.msra.mxu0 %v1384
    %1864 = vmatpush.bf16.msra.mxu0 %v1380
    %1865 = vmatpush.bf16.msra.mxu0 %v1376
    %1866 = vmatmul.bf16.gmra.mxu0 %v116
    %v1867 = vpop.f32.mrf.mxu0
    %v1868 = vadd.f32 %v1855, %v1867
    %v1869 = vpop.f32.mrf.mxu0
    %1870 = vdwg.mxu0
    %1871 = vmatpush.bf16.msra.mxu0 %v1181
    %1872 = vmatpush.bf16.msra.mxu0 %v1177
    %1873 = vmatpush.bf16.msra.mxu0 %v1173
    %1874 = vmatpush.bf16.msra.mxu0 %v1169
    %1875 = vmatpush.bf16.msra.mxu0 %v1165
    %1876 = vmatpush.bf16.msra.mxu0 %v1161
    %1877 = vmatpush.bf16.msra.mxu0 %v1157
    %1878 = vmatpush.bf16.msra.mxu0 %v1153
    %1879 = vmatmul.bf16.gmra.mxu0 %v109
    %v1880 = vpop.f32.mrf.mxu0
    %v1881 = vadd.f32 %v377, %v1880
    %v1882 = vpop.f32.mrf.mxu0
    %1883 = vdwg.mxu0
    %1884 = vmatpush.bf16.msra.mxu0 %v1213
    %1885 = vmatpush.bf16.msra.mxu0 %v1209
    %1886 = vmatpush.bf16.msra.mxu0 %v1205
    %1887 = vmatpush.bf16.msra.mxu0 %v1201
    %1888 = vmatpush.bf16.msra.mxu0 %v1197
    %1889 = vmatpush.bf16.msra.mxu0 %v1193
    %1890 = vmatpush.bf16.msra.mxu0 %v1189
    %1891 = vmatpush.bf16.msra.mxu0 %v1185
    %1892 = vmatmul.bf16.gmra.mxu0 %v110
    %v1893 = vpop.f32.mrf.mxu0
    %v1894 = vadd.f32 %v1881, %v1893
    %v1895 = vpop.f32.mrf.mxu0
    %1896 = vdwg.mxu0
    %1897 = vmatpush.bf16.msra.mxu0 %v1245
    %1898 = vmatpush.bf16.msra.mxu0 %v1241
    %1899 = vmatpush.bf16.msra.mxu0 %v1237
    %1900 = vmatpush.bf16.msra.mxu0 %v1233
    %1901 = vmatpush.bf16.msra.mxu0 %v1229
    %1902 = vmatpush.bf16.msra.mxu0 %v1225
    %1903 = vmatpush.bf16.msra.mxu0 %v1221
    %1904 = vmatpush.bf16.msra.mxu0 %v1217
    %1905 = vmatmul.bf16.gmra.mxu0 %v111
    %v1906 = vpop.f32.mrf.mxu0
    %v1907 = vadd.f32 %v1894, %v1906
    %v1908 = vpop.f32.mrf.mxu0
    %1909 = vdwg.mxu0
    %1910 = vmatpush.bf16.msra.mxu0 %v1277
    %1911 = vmatpush.bf16.msra.mxu0 %v1273
    %1912 = vmatpush.bf16.msra.mxu0 %v1269
    %1913 = vmatpush.bf16.msra.mxu0 %v1265
    %1914 = vmatpush.bf16.msra.mxu0 %v1261
    %1915 = vmatpush.bf16.msra.mxu0 %v1257
    %1916 = vmatpush.bf16.msra.mxu0 %v1253
    %1917 = vmatpush.bf16.msra.mxu0 %v1249
    %1918 = vmatmul.bf16.gmra.mxu0 %v112
    %v1919 = vpop.f32.mrf.mxu0
    %v1920 = vadd.f32 %v1907, %v1919
    %v1921 = vpop.f32.mrf.mxu0
    %1922 = vdwg.mxu0
    %1923 = vmatpush.bf16.msra.mxu0 %v1309
    %1924 = vmatpush.bf16.msra.mxu0 %v1305
    %1925 = vmatpush.bf16.msra.mxu0 %v1301
    %1926 = vmatpush.bf16.msra.mxu0 %v1297
    %1927 = vmatpush.bf16.msra.mxu0 %v1293
    %1928 = vmatpush.bf16.msra.mxu0 %v1289
    %1929 = vmatpush.bf16.msra.mxu0 %v1285
    %1930 = vmatpush.bf16.msra.mxu0 %v1281
    %1931 = vmatmul.bf16.gmra.mxu0 %v113
    %v1932 = vpop.f32.mrf.mxu0
    %v1933 = vadd.f32 %v1920, %v1932
    %v1934 = vpop.f32.mrf.mxu0
    %1935 = vdwg.mxu0
    %1936 = vmatpush.bf16.msra.mxu0 %v1341
    %1937 = vmatpush.bf16.msra.mxu0 %v1337
    %1938 = vmatpush.bf16.msra.mxu0 %v1333
    %1939 = vmatpush.bf16.msra.mxu0 %v1329
    %1940 = vmatpush.bf16.msra.mxu0 %v1325
    %1941 = vmatpush.bf16.msra.mxu0 %v1321
    %1942 = vmatpush.bf16.msra.mxu0 %v1317
    %1943 = vmatpush.bf16.msra.mxu0 %v1313
    %1944 = vmatmul.bf16.gmra.mxu0 %v114
    %v1945 = vpop.f32.mrf.mxu0
    %v1946 = vadd.f32 %v1933, %v1945
    %v1947 = vpop.f32.mrf.mxu0
    %1948 = vdwg.mxu0
    %1949 = vmatpush.bf16.msra.mxu0 %v1373
    %1950 = vmatpush.bf16.msra.mxu0 %v1369
    %1951 = vmatpush.bf16.msra.mxu0 %v1365
    %1952 = vmatpush.bf16.msra.mxu0 %v1361
    %1953 = vmatpush.bf16.msra.mxu0 %v1357
    %1954 = vmatpush.bf16.msra.mxu0 %v1353
    %1955 = vmatpush.bf16.msra.mxu0 %v1349
    %1956 = vmatpush.bf16.msra.mxu0 %v1345
    %1957 = vmatmul.bf16.gmra.mxu0 %v115
    %v1958 = vpop.f32.mrf.mxu0
    %v1959 = vadd.f32 %v1946, %v1958
    %v1960 = vpop.f32.mrf.mxu0
    %1961 = vdwg.mxu0
    %1962 = vmatpush.bf16.msra.mxu0 %v1405
    %1963 = vmatpush.bf16.msra.mxu0 %v1401
    %1964 = vmatpush.bf16.msra.mxu0 %v1397
    %1965 = vmatpush.bf16.msra.mxu0 %v1393
    %1966 = vmatpush.bf16.msra.mxu0 %v1389
    %1967 = vmatpush.bf16.msra.mxu0 %v1385
    %1968 = vmatpush.bf16.msra.mxu0 %v1381
    %1969 = vmatpush.bf16.msra.mxu0 %v1377
    %1970 = vmatmul.bf16.gmra.mxu0 %v116
    %v1971 = vpop.f32.mrf.mxu0
    %v1972 = vadd.f32 %v1959, %v1971
    %v1973 = vpop.f32.mrf.mxu0
    %1974 = vdwg.mxu0
    %1975 = vmatpush.bf16.msra.mxu0 %v1182
    %1976 = vmatpush.bf16.msra.mxu0 %v1178
    %1977 = vmatpush.bf16.msra.mxu0 %v1174
    %1978 = vmatpush.bf16.msra.mxu0 %v1170
    %1979 = vmatpush.bf16.msra.mxu0 %v1166
    %1980 = vmatpush.bf16.msra.mxu0 %v1162
    %1981 = vmatpush.bf16.msra.mxu0 %v1158
    %1982 = vmatpush.bf16.msra.mxu0 %v1154
    %1983 = vmatmul.bf16.gmra.mxu0 %v109
    %v1984 = vpop.f32.mrf.mxu0
    %v1985 = vadd.f32 %v378, %v1984
    %v1986 = vpop.f32.mrf.mxu0
    %1987 = vdwg.mxu0
    %1988 = vmatpush.bf16.msra.mxu0 %v1214
    %1989 = vmatpush.bf16.msra.mxu0 %v1210
    %1990 = vmatpush.bf16.msra.mxu0 %v1206
    %1991 = vmatpush.bf16.msra.mxu0 %v1202
    %1992 = vmatpush.bf16.msra.mxu0 %v1198
    %1993 = vmatpush.bf16.msra.mxu0 %v1194
    %1994 = vmatpush.bf16.msra.mxu0 %v1190
    %1995 = vmatpush.bf16.msra.mxu0 %v1186
    %1996 = vmatmul.bf16.gmra.mxu0 %v110
    %v1997 = vpop.f32.mrf.mxu0
    %v1998 = vadd.f32 %v1985, %v1997
    %v1999 = vpop.f32.mrf.mxu0
    %2000 = vdwg.mxu0
    %2001 = vmatpush.bf16.msra.mxu0 %v1246
    %2002 = vmatpush.bf16.msra.mxu0 %v1242
    %2003 = vmatpush.bf16.msra.mxu0 %v1238
    %2004 = vmatpush.bf16.msra.mxu0 %v1234
    %2005 = vmatpush.bf16.msra.mxu0 %v1230
    %2006 = vmatpush.bf16.msra.mxu0 %v1226
    %2007 = vmatpush.bf16.msra.mxu0 %v1222
    %2008 = vmatpush.bf16.msra.mxu0 %v1218
    %2009 = vmatmul.bf16.gmra.mxu0 %v111
    %v2010 = vpop.f32.mrf.mxu0
    %v2011 = vadd.f32 %v1998, %v2010
    %v2012 = vpop.f32.mrf.mxu0
    %2013 = vdwg.mxu0
    %2014 = vmatpush.bf16.msra.mxu0 %v1278
    %2015 = vmatpush.bf16.msra.mxu0 %v1274
    %2016 = vmatpush.bf16.msra.mxu0 %v1270
    %2017 = vmatpush.bf16.msra.mxu0 %v1266
    %2018 = vmatpush.bf16.msra.mxu0 %v1262
    %2019 = vmatpush.bf16.msra.mxu0 %v1258
    %2020 = vmatpush.bf16.msra.mxu0 %v1254
    %2021 = vmatpush.bf16.msra.mxu0 %v1250
    %2022 = vmatmul.bf16.gmra.mxu0 %v112
    %v2023 = vpop.f32.mrf.mxu0
    %v2024 = vadd.f32 %v2011, %v2023
    %v2025 = vpop.f32.mrf.mxu0
    %2026 = vdwg.mxu0
    %2027 = vmatpush.bf16.msra.mxu0 %v1310
    %2028 = vmatpush.bf16.msra.mxu0 %v1306
    %2029 = vmatpush.bf16.msra.mxu0 %v1302
    %2030 = vmatpush.bf16.msra.mxu0 %v1298
    %2031 = vmatpush.bf16.msra.mxu0 %v1294
    %2032 = vmatpush.bf16.msra.mxu0 %v1290
    %2033 = vmatpush.bf16.msra.mxu0 %v1286
    %2034 = vmatpush.bf16.msra.mxu0 %v1282
    %2035 = vmatmul.bf16.gmra.mxu0 %v113
    %v2036 = vpop.f32.mrf.mxu0
    %v2037 = vadd.f32 %v2024, %v2036
    %v2038 = vpop.f32.mrf.mxu0
    %2039 = vdwg.mxu0
    %2040 = vmatpush.bf16.msra.mxu0 %v1342
    %2041 = vmatpush.bf16.msra.mxu0 %v1338
    %2042 = vmatpush.bf16.msra.mxu0 %v1334
    %2043 = vmatpush.bf16.msra.mxu0 %v1330
    %2044 = vmatpush.bf16.msra.mxu0 %v1326
    %2045 = vmatpush.bf16.msra.mxu0 %v1322
    %2046 = vmatpush.bf16.msra.mxu0 %v1318
    %2047 = vmatpush.bf16.msra.mxu0 %v1314
    %2048 = vmatmul.bf16.gmra.mxu0 %v114
    %v2049 = vpop.f32.mrf.mxu0
    %v2050 = vadd.f32 %v2037, %v2049
    %v2051 = vpop.f32.mrf.mxu0
    %2052 = vdwg.mxu0
    %2053 = vmatpush.bf16.msra.mxu0 %v1374
    %2054 = vmatpush.bf16.msra.mxu0 %v1370
    %2055 = vmatpush.bf16.msra.mxu0 %v1366
    %2056 = vmatpush.bf16.msra.mxu0 %v1362
    %2057 = vmatpush.bf16.msra.mxu0 %v1358
    %2058 = vmatpush.bf16.msra.mxu0 %v1354
    %2059 = vmatpush.bf16.msra.mxu0 %v1350
    %2060 = vmatpush.bf16.msra.mxu0 %v1346
    %2061 = vmatmul.bf16.gmra.mxu0 %v115
    %v2062 = vpop.f32.mrf.mxu0
    %v2063 = vadd.f32 %v2050, %v2062
    %v2064 = vpop.f32.mrf.mxu0
    %2065 = vdwg.mxu0
    %2066 = vmatpush.bf16.msra.mxu0 %v1406
    %2067 = vmatpush.bf16.msra.mxu0 %v1402
    %2068 = vmatpush.bf16.msra.mxu0 %v1398
    %2069 = vmatpush.bf16.msra.mxu0 %v1394
    %2070 = vmatpush.bf16.msra.mxu0 %v1390
    %2071 = vmatpush.bf16.msra.mxu0 %v1386
    %2072 = vmatpush.bf16.msra.mxu0 %v1382
    %2073 = vmatpush.bf16.msra.mxu0 %v1378
    %2074 = vmatmul.bf16.gmra.mxu0 %v116
    %v2075 = vpop.f32.mrf.mxu0
    %v2076 = vadd.f32 %v2063, %v2075
    %v2077 = vpop.f32.mrf.mxu0
    %2078 = vdwg.mxu0
    %v2079 = vmax.f32 %v1764, 0.0
    %v2080 = vmax.f32 %v1868, 0.0
    %v2081 = vmax.f32 %v1972, 0.0
    %v2082 = vmax.f32 %v2076, 0.0
    %v2083 = vpack.c.bf16 %v2079, %v2079
    %v2084 = vpack.c.bf16 %v2080, %v2080
    %v2085 = vpack.c.bf16 %v2081, %v2081
    %v2086 = vpack.c.bf16 %v2082, %v2082
    %v2087 = vld [vmem:[#allocation8] sm:$0xff]
    %v2088 = vld [vmem:[#allocation8 + $0x8] sm:$0xff]
    %v2089 = vld [vmem:[#allocation8 + $0x10] sm:$0xff]
    %v2090 = vld [vmem:[#allocation8 + $0x18] sm:$0xff]
    %v2091 = vld [vmem:[#allocation8 + $0x20] sm:$0xff]
    %v2092 = vld [vmem:[#allocation8 + $0x28] sm:$0xff]
    %v2093 = vld [vmem:[#allocation8 + $0x30] sm:$0xff]
    %v2094 = vld [vmem:[#allocation8 + $0x38] sm:$0xff]
    %v2095 = vld [vmem:[#allocation8 + $0x40] sm:$0xff]
    %v2096 = vld [vmem:[#allocation8 + $0x48] sm:$0xff]
    %v2097 = vld [vmem:[#allocation8 + $0x50] sm:$0xff]
    %v2098 = vld [vmem:[#allocation8 + $0x58] sm:$0xff]
    %v2099 = vld [vmem:[#allocation8 + $0x60] sm:$0xff]
    %v2100 = vld [vmem:[#allocation8 + $0x68] sm:$0xff]
    %v2101 = vld [vmem:[#allocation8 + $0x70] sm:$0xff]
    %v2102 = vld [vmem:[#allocation8 + $0x78] sm:$0xff]
    %v2103 = vld [vmem:[#allocation8 + $0x80] sm:$0xff]
    %v2104 = vld [vmem:[#allocation8 + $0x88] sm:$0xff]
    %v2105 = vld [vmem:[#allocation8 + $0x90] sm:$0xff]
    %v2106 = vld [vmem:[#allocation8 + $0x98] sm:$0xff]
    %v2107 = vld [vmem:[#allocation8 + $0xa0] sm:$0xff]
    %v2108 = vld [vmem:[#allocation8 + $0xa8] sm:$0xff]
    %v2109 = vld [vmem:[#allocation8 + $0xb0] sm:$0xff]
    %v2110 = vld [vmem:[#allocation8 + $0xb8] sm:$0xff]
    %v2111 = vld [vmem:[#allocation8 + $0xc0] sm:$0xff]
    %v2112 = vld [vmem:[#allocation8 + $0xc8] sm:$0xff]
    %v2113 = vld [vmem:[#allocation8 + $0xd0] sm:$0xff]
    %v2114 = vld [vmem:[#allocation8 + $0xd8] sm:$0xff]
    %v2115 = vld [vmem:[#allocation8 + $0xe0] sm:$0xff]
    %v2116 = vld [vmem:[#allocation8 + $0xe8] sm:$0xff]
    %v2117 = vld [vmem:[#allocation8 + $0xf0] sm:$0xff]
    %v2118 = vld [vmem:[#allocation8 + $0xf8] sm:$0xff]
    %v2119 = vld [vmem:[#allocation8 + $0x100] sm:$0xff]
    %v2120 = vld [vmem:[#allocation8 + $0x108] sm:$0xff]
    %v2121 = vld [vmem:[#allocation8 + $0x110] sm:$0xff]
    %v2122 = vld [vmem:[#allocation8 + $0x118] sm:$0xff]
    %v2123 = vld [vmem:[#allocation8 + $0x120] sm:$0xff]
    %v2124 = vld [vmem:[#allocation8 + $0x128] sm:$0xff]
    %v2125 = vld [vmem:[#allocation8 + $0x130] sm:$0xff]
    %v2126 = vld [vmem:[#allocation8 + $0x138] sm:$0xff]
    %v2127 = vld [vmem:[#allocation8 + $0x140] sm:$0xff]
    %v2128 = vld [vmem:[#allocation8 + $0x148] sm:$0xff]
    %v2129 = vld [vmem:[#allocation8 + $0x150] sm:$0xff]
    %v2130 = vld [vmem:[#allocation8 + $0x158] sm:$0xff]
    %v2131 = vld [vmem:[#allocation8 + $0x160] sm:$0xff]
    %v2132 = vld [vmem:[#allocation8 + $0x168] sm:$0xff]
    %v2133 = vld [vmem:[#allocation8 + $0x170] sm:$0xff]
    %v2134 = vld [vmem:[#allocation8 + $0x178] sm:$0xff]
    %v2135 = vld [vmem:[#allocation8 + $0x180] sm:$0xff]
    %v2136 = vld [vmem:[#allocation8 + $0x188] sm:$0xff]
    %v2137 = vld [vmem:[#allocation8 + $0x190] sm:$0xff]
    %v2138 = vld [vmem:[#allocation8 + $0x198] sm:$0xff]
    %v2139 = vld [vmem:[#allocation8 + $0x1a0] sm:$0xff]
    %v2140 = vld [vmem:[#allocation8 + $0x1a8] sm:$0xff]
    %v2141 = vld [vmem:[#allocation8 + $0x1b0] sm:$0xff]
    %v2142 = vld [vmem:[#allocation8 + $0x1b8] sm:$0xff]
    %v2143 = vld [vmem:[#allocation8 + $0x1c0] sm:$0xff]
    %v2144 = vld [vmem:[#allocation8 + $0x1c8] sm:$0xff]
    %v2145 = vld [vmem:[#allocation8 + $0x1d0] sm:$0xff]
    %v2146 = vld [vmem:[#allocation8 + $0x1d8] sm:$0xff]
    %v2147 = vld [vmem:[#allocation8 + $0x1e0] sm:$0xff]
    %v2148 = vld [vmem:[#allocation8 + $0x1e8] sm:$0xff]
    %v2149 = vld [vmem:[#allocation8 + $0x1f0] sm:$0xff]
    %v2150 = vld [vmem:[#allocation8 + $0x1f8] sm:$0xff]
    %v2151 = vld [vmem:[%s4] sm:$0x3]
    %v2153 = vperm.slane %v2151, 0
    %v2154 = vperm.slane %v2151, 1
    %v2221 = vunpack.c.l.b16 %v2087
    %v2222 = vunpack.c.h.b16 %v2087
    %v2223 = vunpack.c.l.b16 %v2088
    %v2224 = vunpack.c.h.b16 %v2088
    %v2225 = vunpack.c.l.b16 %v2089
    %v2226 = vunpack.c.h.b16 %v2089
    %v2227 = vunpack.c.l.b16 %v2090
    %v2228 = vunpack.c.h.b16 %v2090
    %v2229 = vunpack.c.l.b16 %v2091
    %v2230 = vunpack.c.h.b16 %v2091
    %v2231 = vunpack.c.l.b16 %v2092
    %v2232 = vunpack.c.h.b16 %v2092
    %v2233 = vunpack.c.l.b16 %v2093
    %v2234 = vunpack.c.h.b16 %v2093
    %v2235 = vunpack.c.l.b16 %v2094
    %v2236 = vunpack.c.h.b16 %v2094
    %v2237 = vunpack.c.l.b16 %v2095
    %v2238 = vunpack.c.h.b16 %v2095
    %v2239 = vunpack.c.l.b16 %v2096
    %v2240 = vunpack.c.h.b16 %v2096
    %v2241 = vunpack.c.l.b16 %v2097
    %v2242 = vunpack.c.h.b16 %v2097
    %v2243 = vunpack.c.l.b16 %v2098
    %v2244 = vunpack.c.h.b16 %v2098
    %v2245 = vunpack.c.l.b16 %v2099
    %v2246 = vunpack.c.h.b16 %v2099
    %v2247 = vunpack.c.l.b16 %v2100
    %v2248 = vunpack.c.h.b16 %v2100
    %v2249 = vunpack.c.l.b16 %v2101
    %v2250 = vunpack.c.h.b16 %v2101
    %v2251 = vunpack.c.l.b16 %v2102
    %v2252 = vunpack.c.h.b16 %v2102
    %v2253 = vunpack.c.l.b16 %v2103
    %v2254 = vunpack.c.h.b16 %v2103
    %v2255 = vunpack.c.l.b16 %v2104
    %v2256 = vunpack.c.h.b16 %v2104
    %v2257 = vunpack.c.l.b16 %v2105
    %v2258 = vunpack.c.h.b16 %v2105
    %v2259 = vunpack.c.l.b16 %v2106
    %v2260 = vunpack.c.h.b16 %v2106
    %v2261 = vunpack.c.l.b16 %v2107
    %v2262 = vunpack.c.h.b16 %v2107
    %v2263 = vunpack.c.l.b16 %v2108
    %v2264 = vunpack.c.h.b16 %v2108
    %v2265 = vunpack.c.l.b16 %v2109
    %v2266 = vunpack.c.h.b16 %v2109
    %v2267 = vunpack.c.l.b16 %v2110
    %v2268 = vunpack.c.h.b16 %v2110
    %v2269 = vunpack.c.l.b16 %v2111
    %v2270 = vunpack.c.h.b16 %v2111
    %v2271 = vunpack.c.l.b16 %v2112
    %v2272 = vunpack.c.h.b16 %v2112
    %v2273 = vunpack.c.l.b16 %v2113
    %v2274 = vunpack.c.h.b16 %v2113
    %v2275 = vunpack.c.l.b16 %v2114
    %v2276 = vunpack.c.h.b16 %v2114
    %v2277 = vunpack.c.l.b16 %v2115
    %v2278 = vunpack.c.h.b16 %v2115
    %v2279 = vunpack.c.l.b16 %v2116
    %v2280 = vunpack.c.h.b16 %v2116
    %v2281 = vunpack.c.l.b16 %v2117
    %v2282 = vunpack.c.h.b16 %v2117
    %v2283 = vunpack.c.l.b16 %v2118
    %v2284 = vunpack.c.h.b16 %v2118
    %v2285 = vunpack.c.l.b16 %v2119
    %v2286 = vunpack.c.h.b16 %v2119
    %v2287 = vunpack.c.l.b16 %v2120
    %v2288 = vunpack.c.h.b16 %v2120
    %v2289 = vunpack.c.l.b16 %v2121
    %v2290 = vunpack.c.h.b16 %v2121
    %v2291 = vunpack.c.l.b16 %v2122
    %v2292 = vunpack.c.h.b16 %v2122
    %v2293 = vunpack.c.l.b16 %v2123
    %v2294 = vunpack.c.h.b16 %v2123
    %v2295 = vunpack.c.l.b16 %v2124
    %v2296 = vunpack.c.h.b16 %v2124
    %v2297 = vunpack.c.l.b16 %v2125
    %v2298 = vunpack.c.h.b16 %v2125
    %v2299 = vunpack.c.l.b16 %v2126
    %v2300 = vunpack.c.h.b16 %v2126
    %v2301 = vunpack.c.l.b16 %v2127
    %v2302 = vunpack.c.h.b16 %v2127
    %v2303 = vunpack.c.l.b16 %v2128
    %v2304 = vunpack.c.h.b16 %v2128
    %v2305 = vunpack.c.l.b16 %v2129
    %v2306 = vunpack.c.h.b16 %v2129
    %v2307 = vunpack.c.l.b16 %v2130
    %v2308 = vunpack.c.h.b16 %v2130
    %v2309 = vunpack.c.l.b16 %v2131
    %v2310 = vunpack.c.h.b16 %v2131
    %v2311 = vunpack.c.l.b16 %v2132
    %v2312 = vunpack.c.h.b16 %v2132
    %v2313 = vunpack.c.l.b16 %v2133
    %v2314 = vunpack.c.h.b16 %v2133
    %v2315 = vunpack.c.l.b16 %v2134
    %v2316 = vunpack.c.h.b16 %v2134
    %v2317 = vunpack.c.l.b16 %v2135
    %v2318 = vunpack.c.h.b16 %v2135
    %v2319 = vunpack.c.l.b16 %v2136
    %v2320 = vunpack.c.h.b16 %v2136
    %v2321 = vunpack.c.l.b16 %v2137
    %v2322 = vunpack.c.h.b16 %v2137
    %v2323 = vunpack.c.l.b16 %v2138
    %v2324 = vunpack.c.h.b16 %v2138
    %v2325 = vunpack.c.l.b16 %v2139
    %v2326 = vunpack.c.h.b16 %v2139
    %v2327 = vunpack.c.l.b16 %v2140
    %v2328 = vunpack.c.h.b16 %v2140
    %v2329 = vunpack.c.l.b16 %v2141
    %v2330 = vunpack.c.h.b16 %v2141
    %v2331 = vunpack.c.l.b16 %v2142
    %v2332 = vunpack.c.h.b16 %v2142
    %v2333 = vunpack.c.l.b16 %v2143
    %v2334 = vunpack.c.h.b16 %v2143
    %v2335 = vunpack.c.l.b16 %v2144
    %v2336 = vunpack.c.h.b16 %v2144
    %v2337 = vunpack.c.l.b16 %v2145
    %v2338 = vunpack.c.h.b16 %v2145
    %v2339 = vunpack.c.l.b16 %v2146
    %v2340 = vunpack.c.h.b16 %v2146
    %v2341 = vunpack.c.l.b16 %v2147
    %v2342 = vunpack.c.h.b16 %v2147
    %v2343 = vunpack.c.l.b16 %v2148
    %v2344 = vunpack.c.h.b16 %v2148
    %v2345 = vunpack.c.l.b16 %v2149
    %v2346 = vunpack.c.h.b16 %v2149
    %v2347 = vunpack.c.l.b16 %v2150
    %v2348 = vunpack.c.h.b16 %v2150
    %v2349 = vpack.c.b16 %v2223, %v2221
    %v2350 = vpack.c.b16 %v2224, %v2222
    %v2351 = vpack.c.b16 %v2227, %v2225
    %v2352 = vpack.c.b16 %v2228, %v2226
    %v2353 = vpack.c.b16 %v2231, %v2229
    %v2354 = vpack.c.b16 %v2232, %v2230
    %v2355 = vpack.c.b16 %v2235, %v2233
    %v2356 = vpack.c.b16 %v2236, %v2234
    %v2357 = vpack.c.b16 %v2239, %v2237
    %v2358 = vpack.c.b16 %v2240, %v2238
    %v2359 = vpack.c.b16 %v2243, %v2241
    %v2360 = vpack.c.b16 %v2244, %v2242
    %v2361 = vpack.c.b16 %v2247, %v2245
    %v2362 = vpack.c.b16 %v2248, %v2246
    %v2363 = vpack.c.b16 %v2251, %v2249
    %v2364 = vpack.c.b16 %v2252, %v2250
    %v2365 = vpack.c.b16 %v2255, %v2253
    %v2366 = vpack.c.b16 %v2256, %v2254
    %v2367 = vpack.c.b16 %v2259, %v2257
    %v2368 = vpack.c.b16 %v2260, %v2258
    %v2369 = vpack.c.b16 %v2263, %v2261
    %v2370 = vpack.c.b16 %v2264, %v2262
    %v2371 = vpack.c.b16 %v2267, %v2265
    %v2372 = vpack.c.b16 %v2268, %v2266
    %v2373 = vpack.c.b16 %v2271, %v2269
    %v2374 = vpack.c.b16 %v2272, %v2270
    %v2375 = vpack.c.b16 %v2275, %v2273
    %v2376 = vpack.c.b16 %v2276, %v2274
    %v2377 = vpack.c.b16 %v2279, %v2277
    %v2378 = vpack.c.b16 %v2280, %v2278
    %v2379 = vpack.c.b16 %v2283, %v2281
    %v2380 = vpack.c.b16 %v2284, %v2282
    %v2381 = vpack.c.b16 %v2287, %v2285
    %v2382 = vpack.c.b16 %v2288, %v2286
    %v2383 = vpack.c.b16 %v2291, %v2289
    %v2384 = vpack.c.b16 %v2292, %v2290
    %v2385 = vpack.c.b16 %v2295, %v2293
    %v2386 = vpack.c.b16 %v2296, %v2294
    %v2387 = vpack.c.b16 %v2299, %v2297
    %v2388 = vpack.c.b16 %v2300, %v2298
    %v2389 = vpack.c.b16 %v2303, %v2301
    %v2390 = vpack.c.b16 %v2304, %v2302
    %v2391 = vpack.c.b16 %v2307, %v2305
    %v2392 = vpack.c.b16 %v2308, %v2306
    %v2393 = vpack.c.b16 %v2311, %v2309
    %v2394 = vpack.c.b16 %v2312, %v2310
    %v2395 = vpack.c.b16 %v2315, %v2313
    %v2396 = vpack.c.b16 %v2316, %v2314
    %v2397 = vpack.c.b16 %v2319, %v2317
    %v2398 = vpack.c.b16 %v2320, %v2318
    %v2399 = vpack.c.b16 %v2323, %v2321
    %v2400 = vpack.c.b16 %v2324, %v2322
    %v2401 = vpack.c.b16 %v2327, %v2325
    %v2402 = vpack.c.b16 %v2328, %v2326
    %v2403 = vpack.c.b16 %v2331, %v2329
    %v2404 = vpack.c.b16 %v2332, %v2330
    %v2405 = vpack.c.b16 %v2335, %v2333
    %v2406 = vpack.c.b16 %v2336, %v2334
    %v2407 = vpack.c.b16 %v2339, %v2337
    %v2408 = vpack.c.b16 %v2340, %v2338
    %v2409 = vpack.c.b16 %v2343, %v2341
    %v2410 = vpack.c.b16 %v2344, %v2342
    %v2411 = vpack.c.b16 %v2347, %v2345
    %v2412 = vpack.c.b16 %v2348, %v2346
    %2477 = vmatpush.bf16.msra.mxu0 %v2363
    %2478 = vmatpush.bf16.msra.mxu0 %v2361
    %2479 = vmatpush.bf16.msra.mxu0 %v2359
    %2480 = vmatpush.bf16.msra.mxu0 %v2357
    %2481 = vmatpush.bf16.msra.mxu0 %v2355
    %2482 = vmatpush.bf16.msra.mxu0 %v2353
    %2483 = vmatpush.bf16.msra.mxu0 %v2351
    %2484 = vmatpush.bf16.msra.mxu0 %v2349
    %2485 = vmatmul.bf16.gmra.mxu0 %v2083
    %v2486 = vpop.f32.mrf.mxu0
    %v2487 = vadd.f32 %v2153, %v2486
    %v2488 = vpop.f32.mrf.mxu0
    %2489 = vdwg.mxu0
    %2490 = vmatpush.bf16.msra.mxu0 %v2379
    %2491 = vmatpush.bf16.msra.mxu0 %v2377
    %2492 = vmatpush.bf16.msra.mxu0 %v2375
    %2493 = vmatpush.bf16.msra.mxu0 %v2373
    %2494 = vmatpush.bf16.msra.mxu0 %v2371
    %2495 = vmatpush.bf16.msra.mxu0 %v2369
    %2496 = vmatpush.bf16.msra.mxu0 %v2367
    %2497 = vmatpush.bf16.msra.mxu0 %v2365
    %2498 = vmatmul.bf16.gmra.mxu0 %v2084
    %v2499 = vpop.f32.mrf.mxu0
    %v2500 = vadd.f32 %v2487, %v2499
    %v2501 = vpop.f32.mrf.mxu0
    %2502 = vdwg.mxu0
    %2503 = vmatpush.bf16.msra.mxu0 %v2395
    %2504 = vmatpush.bf16.msra.mxu0 %v2393
    %2505 = vmatpush.bf16.msra.mxu0 %v2391
    %2506 = vmatpush.bf16.msra.mxu0 %v2389
    %2507 = vmatpush.bf16.msra.mxu0 %v2387
    %2508 = vmatpush.bf16.msra.mxu0 %v2385
    %2509 = vmatpush.bf16.msra.mxu0 %v2383
    %2510 = vmatpush.bf16.msra.mxu0 %v2381
    %2511 = vmatmul.bf16.gmra.mxu0 %v2085
    %v2512 = vpop.f32.mrf.mxu0
    %v2513 = vadd.f32 %v2500, %v2512
    %v2514 = vpop.f32.mrf.mxu0
    %2515 = vdwg.mxu0
    %2516 = vmatpush.bf16.msra.mxu0 %v2411
    %2517 = vmatpush.bf16.msra.mxu0 %v2409
    %2518 = vmatpush.bf16.msra.mxu0 %v2407
    %2519 = vmatpush.bf16.msra.mxu0 %v2405
    %2520 = vmatpush.bf16.msra.mxu0 %v2403
    %2521 = vmatpush.bf16.msra.mxu0 %v2401
    %2522 = vmatpush.bf16.msra.mxu0 %v2399
    %2523 = vmatpush.bf16.msra.mxu0 %v2397
    %2524 = vmatmul.bf16.gmra.mxu0 %v2086
    %v2525 = vpop.f32.mrf.mxu0
    %v2526 = vadd.f32 %v2513, %v2525
    %v2527 = vpop.f32.mrf.mxu0
    %2528 = vdwg.mxu0
    %2529 = vmatpush.bf16.msra.mxu0 %v2364
    %2530 = vmatpush.bf16.msra.mxu0 %v2362
    %2531 = vmatpush.bf16.msra.mxu0 %v2360
    %2532 = vmatpush.bf16.msra.mxu0 %v2358
    %2533 = vmatpush.bf16.msra.mxu0 %v2356
    %2534 = vmatpush.bf16.msra.mxu0 %v2354
    %2535 = vmatpush.bf16.msra.mxu0 %v2352
    %2536 = vmatpush.bf16.msra.mxu0 %v2350
    %2537 = vmatmul.bf16.gmra.mxu0 %v2083
    %v2538 = vpop.f32.mrf.mxu0
    %v2539 = vadd.f32 %v2154, %v2538
    %v2540 = vpop.f32.mrf.mxu0
    %2541 = vdwg.mxu0
    %2542 = vmatpush.bf16.msra.mxu0 %v2380
    %2543 = vmatpush.bf16.msra.mxu0 %v2378
    %2544 = vmatpush.bf16.msra.mxu0 %v2376
    %2545 = vmatpush.bf16.msra.mxu0 %v2374
    %2546 = vmatpush.bf16.msra.mxu0 %v2372
    %2547 = vmatpush.bf16.msra.mxu0 %v2370
    %2548 = vmatpush.bf16.msra.mxu0 %v2368
    %2549 = vmatpush.bf16.msra.mxu0 %v2366
    %2550 = vmatmul.bf16.gmra.mxu0 %v2084
    %v2551 = vpop.f32.mrf.mxu0
    %v2552 = vadd.f32 %v2539, %v2551
    %v2553 = vpop.f32.mrf.mxu0
    %2554 = vdwg.mxu0
    %2555 = vmatpush.bf16.msra.mxu0 %v2396
    %2556 = vmatpush.bf16.msra.mxu0 %v2394
    %2557 = vmatpush.bf16.msra.mxu0 %v2392
    %2558 = vmatpush.bf16.msra.mxu0 %v2390
    %2559 = vmatpush.bf16.msra.mxu0 %v2388
    %2560 = vmatpush.bf16.msra.mxu0 %v2386
    %2561 = vmatpush.bf16.msra.mxu0 %v2384
    %2562 = vmatpush.bf16.msra.mxu0 %v2382
    %2563 = vmatmul.bf16.gmra.mxu0 %v2085
    %v2564 = vpop.f32.mrf.mxu0
    %v2565 = vadd.f32 %v2552, %v2564
    %v2566 = vpop.f32.mrf.mxu0
    %2567 = vdwg.mxu0
    %2568 = vmatpush.bf16.msra.mxu0 %v2412
    %2569 = vmatpush.bf16.msra.mxu0 %v2410
    %2570 = vmatpush.bf16.msra.mxu0 %v2408
    %2571 = vmatpush.bf16.msra.mxu0 %v2406
    %2572 = vmatpush.bf16.msra.mxu0 %v2404
    %2573 = vmatpush.bf16.msra.mxu0 %v2402
    %2574 = vmatpush.bf16.msra.mxu0 %v2400
    %2575 = vmatpush.bf16.msra.mxu0 %v2398
    %2576 = vmatmul.bf16.gmra.mxu0 %v2086
    %v2577 = vpop.f32.mrf.mxu0
    %v2578 = vadd.f32 %v2565, %v2577
    %v2579 = vpop.f32.mrf.mxu0
    %2580 = vdwg.mxu0
    %v2581 = vmax.f32 %v2526, 0.0
    %v2582 = vmax.f32 %v2578, 0.0
    %v2583 = vpack.c.bf16 %v2581, %v2581
    %v2584 = vpack.c.bf16 %v2582, %v2582
    %v2585 = vld [vmem:[#allocation10] sm:$0xf]
    %v2586 = vld [vmem:[#allocation10 + $0x4] sm:$0xf]
    %v2587 = vld [vmem:[#allocation10 + $0x8] sm:$0xf]
    %v2588 = vld [vmem:[#allocation10 + $0xc] sm:$0xf]
    %v2589 = vld [vmem:[#allocation10 + $0x10] sm:$0xf]
    %v2590 = vld [vmem:[#allocation10 + $0x14] sm:$0xf]
    %v2591 = vld [vmem:[#allocation10 + $0x18] sm:$0xf]
    %v2592 = vld [vmem:[#allocation10 + $0x1c] sm:$0xf]
    %v2593 = vld [vmem:[#allocation10 + $0x20] sm:$0xf]
    %v2594 = vld [vmem:[#allocation10 + $0x24] sm:$0xf]
    %v2595 = vld [vmem:[#allocation10 + $0x28] sm:$0xf]
    %v2596 = vld [vmem:[#allocation10 + $0x2c] sm:$0xf]
    %v2597 = vld [vmem:[#allocation10 + $0x30] sm:$0xf]
    %v2598 = vld [vmem:[#allocation10 + $0x34] sm:$0xf]
    %v2599 = vld [vmem:[#allocation10 + $0x38] sm:$0xf]
    %v2600 = vld [vmem:[#allocation10 + $0x3c] sm:$0xf]
    %v2601 = vld [vmem:[#allocation10 + $0x40] sm:$0xf]
    %v2602 = vld [vmem:[#allocation10 + $0x44] sm:$0xf]
    %v2603 = vld [vmem:[#allocation10 + $0x48] sm:$0xf]
    %v2604 = vld [vmem:[#allocation10 + $0x4c] sm:$0xf]
    %v2605 = vld [vmem:[#allocation10 + $0x50] sm:$0xf]
    %v2606 = vld [vmem:[#allocation10 + $0x54] sm:$0xf]
    %v2607 = vld [vmem:[#allocation10 + $0x58] sm:$0xf]
    %v2608 = vld [vmem:[#allocation10 + $0x5c] sm:$0xf]
    %v2609 = vld [vmem:[#allocation10 + $0x60] sm:$0xf]
    %v2610 = vld [vmem:[#allocation10 + $0x64] sm:$0xf]
    %v2611 = vld [vmem:[#allocation10 + $0x68] sm:$0xf]
    %v2612 = vld [vmem:[#allocation10 + $0x6c] sm:$0xf]
    %v2613 = vld [vmem:[#allocation10 + $0x70] sm:$0xf]
    %v2614 = vld [vmem:[#allocation10 + $0x74] sm:$0xf]
    %v2615 = vld [vmem:[#allocation10 + $0x78] sm:$0xf]
    %v2616 = vld [vmem:[#allocation10 + $0x7c] sm:$0xf]
    %v2617 = vld [vmem:[%s6] sm:$0x1]
    %v2619 = vperm.slane %v2617, 0
    %v2653 = vunpack.c.l.b16 %v2585
    %v2654 = vunpack.c.l.b16 %v2586
    %v2655 = vunpack.c.l.b16 %v2587
    %v2656 = vunpack.c.l.b16 %v2588
    %v2657 = vunpack.c.l.b16 %v2589
    %v2658 = vunpack.c.l.b16 %v2590
    %v2659 = vunpack.c.l.b16 %v2591
    %v2660 = vunpack.c.l.b16 %v2592
    %v2661 = vunpack.c.l.b16 %v2593
    %v2662 = vunpack.c.l.b16 %v2594
    %v2663 = vunpack.c.l.b16 %v2595
    %v2664 = vunpack.c.l.b16 %v2596
    %v2665 = vunpack.c.l.b16 %v2597
    %v2666 = vunpack.c.l.b16 %v2598
    %v2667 = vunpack.c.l.b16 %v2599
    %v2668 = vunpack.c.l.b16 %v2600
    %v2669 = vunpack.c.l.b16 %v2601
    %v2670 = vunpack.c.l.b16 %v2602
    %v2671 = vunpack.c.l.b16 %v2603
    %v2672 = vunpack.c.l.b16 %v2604
    %v2673 = vunpack.c.l.b16 %v2605
    %v2674 = vunpack.c.l.b16 %v2606
    %v2675 = vunpack.c.l.b16 %v2607
    %v2676 = vunpack.c.l.b16 %v2608
    %v2677 = vunpack.c.l.b16 %v2609
    %v2678 = vunpack.c.l.b16 %v2610
    %v2679 = vunpack.c.l.b16 %v2611
    %v2680 = vunpack.c.l.b16 %v2612
    %v2681 = vunpack.c.l.b16 %v2613
    %v2682 = vunpack.c.l.b16 %v2614
    %v2683 = vunpack.c.l.b16 %v2615
    %v2684 = vunpack.c.l.b16 %v2616
    %v2685 = vpack.c.b16 %v2654, %v2653
    %v2686 = vpack.c.b16 %v2656, %v2655
    %v2687 = vpack.c.b16 %v2658, %v2657
    %v2688 = vpack.c.b16 %v2660, %v2659
    %v2689 = vpack.c.b16 %v2662, %v2661
    %v2690 = vpack.c.b16 %v2664, %v2663
    %v2691 = vpack.c.b16 %v2666, %v2665
    %v2692 = vpack.c.b16 %v2668, %v2667
    %v2693 = vpack.c.b16 %v2670, %v2669
    %v2694 = vpack.c.b16 %v2672, %v2671
    %v2695 = vpack.c.b16 %v2674, %v2673
    %v2696 = vpack.c.b16 %v2676, %v2675
    %v2697 = vpack.c.b16 %v2678, %v2677
    %v2698 = vpack.c.b16 %v2680, %v2679
    %v2699 = vpack.c.b16 %v2682, %v2681
    %v2700 = vpack.c.b16 %v2684, %v2683
    %2717 = vmatpush.bf16.msra.mxu0 %v2692
    %2718 = vmatpush.bf16.msra.mxu0 %v2691
    %2719 = vmatpush.bf16.msra.mxu0 %v2690
    %2720 = vmatpush.bf16.msra.mxu0 %v2689
    %2721 = vmatpush.bf16.msra.mxu0 %v2688
    %2722 = vmatpush.bf16.msra.mxu0 %v2687
    %2723 = vmatpush.bf16.msra.mxu0 %v2686
    %2724 = vmatpush.bf16.msra.mxu0 %v2685
    %2725 = vmatmul.bf16.gmra.mxu0 %v2583
    %v2726 = vpop.f32.mrf.mxu0
    %v2727 = vadd.f32 %v2619, %v2726
    %v2728 = vpop.f32.mrf.mxu0
    %2729 = vdwg.mxu0
    %2730 = vmatpush.bf16.msra.mxu0 %v2700
    %2731 = vmatpush.bf16.msra.mxu0 %v2699
    %2732 = vmatpush.bf16.msra.mxu0 %v2698
    %2733 = vmatpush.bf16.msra.mxu0 %v2697
    %2734 = vmatpush.bf16.msra.mxu0 %v2696
    %2735 = vmatpush.bf16.msra.mxu0 %v2695
    %2736 = vmatpush.bf16.msra.mxu0 %v2694
    %2737 = vmatpush.bf16.msra.mxu0 %v2693
    %2738 = vmatmul.bf16.gmra.mxu0 %v2584
    %v2739 = vpop.f32.mrf.mxu0
    %v2740 = vadd.f32 %v2727, %v2739
    %v2741 = vpop.f32.mrf.mxu0
    %2742 = vdwg.mxu0
    %2743 = vst [vmem:[#allocation11] sm:$0xff] %v2740
    // Predicated region
    $region50: #{tpu_custom_call.1} parent=1 // pred_check
      _
    $region51: #{tpu_custom_call.1} parent=1 // pred_check_branch
      %2745 = sbr.rel (0) target = $region53
    $region52: #{tpu_custom_call.1} parent=1 // pred_region
      %2747 = vsyncadd [#allocation4], 0
      %s2749 = sshll.u32 [#allocation11], 4
      %s2750 = int_to_ptr.vmem [resolvable:$true] %s2749
      %s2751 = sshll.u32 %s7, 4
      %s2752 = int_to_ptr.hbm [resolvable:$true] %s2751
      %2754 = dma.vmem_to_hbm [thread:$0]  %s2750, 128, %s2752, [#allocation4]
    $region53: #{tpu_custom_call.1} parent=1 // pred_fallthru
      _
    // Predicated region
    $region54: #{tpu_custom_call.1} parent=1 // pred_check
      _
    $region55: #{tpu_custom_call.1} parent=1 // pred_check_branch
      %2756 = sbr.rel (0) target = $region57
    $region56: #{tpu_custom_call.1} parent=1 // pred_region
      %2758 = dma.done [#allocation4], 128
    $region57: #{tpu_custom_call.1} parent=1 // pred_fallthru
      _
    %2759 = vsyncpa [#allocation3], 1
    %2760 = vsyncpa [#allocation6], 1
    %2761 = vsyncpa [#allocation9], 1
    %2762 = vsyncpa [#allocation4], 1

</llo_original>
